<compile_context>
chip_gen: v5e
topology: v5e:2x2
jax: 0.10.0
libtpu: 0.0.40
codegen_flags: <defaults>
</compile_context>

<pallas_src>
import functools

import jax
import jax.numpy as jnp
from jax.experimental import pallas as pl
from jax.experimental.pallas import tpu as pltpu

BN_EPS = 1e-5


def _round_up(x, m):
    return (x + m - 1) // m * m


def _vmem_capacity_bytes():
    try:
        return int(pltpu.get_tpu_info().vmem_capacity_bytes)
    except Exception:
        return 64 * 1024 * 1024          # conservative fallback (v7x per-TC)


def _pick_tile(hw_r, per_lane_bytes, avail_bytes):
    """Largest multiple of 128 dividing hw_r that fits the VMEM lane budget."""
    max_lanes = max(128, (avail_bytes // max(per_lane_bytes, 1)) // 128 * 128)
    best, t = 128, 128
    limit = min(hw_r, max_lanes)
    while t <= limit:
        if hw_r % t == 0:
            best = t
        t += 128
    return best


# ---------------------------------------------------------------------------
# Kernel 1: in-kernel im2col (9 MXU matmuls from static lane-offset slices of a
# halo slab) + per-(batch, spatial-chunk) BN partial statistics.
#   grid = (B, HW_r // tile); both axes "parallel" (no cross-step accumulation).
# ---------------------------------------------------------------------------
def conv_stats_kernel(slab_ref, w_ref, conv_ref, psum_ref, psq_ref,
                      *, W, HW, halo, tile, mask_tail):
    # slab_ref : (Cin, tile + 2*halo)  input slab (flat spatial on lanes, halo'd)
    # w_ref    : (3, 3, Cout, Cin)     weights, resident across the grid
    # conv_ref : (Cout, tile)          conv output tile (lane-dense)
    # psum/psq : (Cout, 1)             per-(b, t) partial sum / sum-of-squares
    def mm(dy, dx):
        off = halo + (dy - 1) * W + (dx - 1)          # static lane offset
        xs = slab_ref[:, off:off + tile]
        return jnp.dot(w_ref[dy, dx], xs, preferred_element_type=jnp.float32)

    acc_c = mm(0, 1) + mm(1, 1) + mm(2, 1)            # dx =  0
    acc_l = mm(0, 0) + mm(1, 0) + mm(2, 0)            # dx = -1
    acc_r = mm(0, 2) + mm(1, 2) + mm(2, 2)            # dx = +1

    pos = pl.program_id(1) * tile + jax.lax.broadcasted_iota(
        jnp.int32, (1, tile), 1)                      # global flat position
    col = pos % W
    acc = (acc_c
           + jnp.where(col != 0, acc_l, 0.0)          # left-edge column wrap
           + jnp.where(col != W - 1, acc_r, 0.0))     # right-edge column wrap
    conv_ref[...] = acc.astype(conv_ref.dtype)

    if mask_tail:                                     # static: only if HW % 128 != 0
        acc = jnp.where(pos < HW, acc, 0.0)
    # TODO(synk): on v5e, if the XLU lane-reduce ever binds, do these sums as
    # jnp.dot(acc, ones((tile, 1))) on the (idle) MXU instead.
    psum_ref[...] = jnp.sum(acc, axis=1, keepdims=True)
    psq_ref[...] = jnp.sum(acc * acc, axis=1, keepdims=True)


# ---------------------------------------------------------------------------
# Kernel 2: fused BN-normalize + split + add + tanh.
#   Scale/shift precomputed once in the wrapper; the hid-split is a sublane
#   slice (assumes hid is a multiple of 8); stores are fully lane-dense.
# ---------------------------------------------------------------------------
def bn_tanh_kernel(conv_ref, sx_ref, sh_ref, sb_ref, ht_ref):
    # conv_ref : (Cout, tile)  (bf16 or f32);  sx/sh/sb : (hid, 1) f32
    hid = ht_ref.shape[0]
    cx = conv_ref[:hid, :].astype(jnp.float32)
    ch = conv_ref[hid:2 * hid, :].astype(jnp.float32)
    ht_ref[...] = jnp.tanh(cx * sx_ref[...] + ch * sh_ref[...] + sb_ref[...])


# ---------------------------------------------------------------------------
# Wrapper: concat / flat zero-pad / halo-slab build (one cheap XLA pass, ~1.1x),
# then the two pallas_calls.  Everything stays NCHW (PyTorch native).
# ---------------------------------------------------------------------------
@functools.partial(jax.jit, static_argnames=("compute_dtype",))
def conv_rnn_cell(xt, state, w, bias, gamma, beta, *, compute_dtype=jnp.bfloat16):
    """xt: (B, inSize, H, W), state: (B, hidSize, H, W) — NCHW.

    w: (3, 3, Cin, Cout) HWIO conv weight.  `bias` is accepted for interface
    parity but never used: a conv bias cancels exactly under train-mode BN.
    """
    del bias
    B, in_size, H, W = xt.shape
    hid = state.shape[1]                 # assumed multiple of 8 (sublane split)
    Cin = in_size + hid
    Cout = 2 * hid
    HW = H * W
    HW_r = _round_up(HW, 128)            # lane-dense padded spatial extent
    pad_hw = HW_r - HW
    halo = W + 1                         # one row + one column of 3x3 reach
    in_dt = jnp.dtype(compute_dtype)
    conv_dt = in_dt                      # bf16 intermediate halves the round trip
    isz = in_dt.itemsize

    # --- tile size / VMEM budget (per generation) ---------------------------
    vmem_cap = _vmem_capacity_bytes()
    vmem_limit = min(vmem_cap * 3 // 4, 96 * 1024 * 1024)
    per_lane = (2 * Cin * isz            # halo slab, double-buffered
                + 2 * Cout * isz         # conv tile, double-buffered
                + 4 * Cout * 4           # f32 accumulators
                + 2 * Cin * isz          # sliced matmul operand copies
                + 2 * hid * 4 + 16)      # kernel-2 output tile + masks
    fixed = 2 * 9 * Cout * Cin * isz + 4 * Cin * halo * isz + (64 << 10)
    avail = max(vmem_limit * 6 // 10 - fixed, 128 * per_lane)
    tile = _pick_tile(HW_r, per_lane, avail)
    n_t = HW_r // tile
    S = tile + 2 * halo

    # --- concat + flat zero-pad + halo slabs --------------------------------
    x = jnp.concatenate([xt, state], axis=1).astype(in_dt)        # (B, Cin, H, W)
    x_flat = x.reshape(B, Cin, HW)
    x_pad = jnp.pad(x_flat, ((0, 0), (0, 0), (halo, pad_hw + halo)))
    x_halo = jnp.stack([x_pad[:, :, t * tile:t * tile + S] for t in range(n_t)],
                       axis=1)                                    # (B, n_t, Cin, S)

    w9 = jnp.transpose(w, (0, 1, 3, 2)).astype(in_dt)             # (3, 3, Cout, Cin)

    kern1 = functools.partial(conv_stats_kernel, W=W, HW=HW, halo=halo,
                              tile=tile, mask_tail=pad_hw > 0)
    conv, psum, psq = pl.pallas_call(
        kern1,
        grid=(B, n_t),
        in_specs=[
            pl.BlockSpec((None, None, Cin, S), lambda b, t: (b, t, 0, 0)),
            pl.BlockSpec((3, 3, Cout, Cin), lambda b, t: (0, 0, 0, 0)),
        ],
        out_specs=[
            pl.BlockSpec((None, Cout, tile), lambda b, t: (b, 0, t)),
            pl.BlockSpec((None, None, Cout, 1), lambda b, t: (b, t, 0, 0)),
            pl.BlockSpec((None, None, Cout, 1), lambda b, t: (b, t, 0, 0)),
        ],
        out_shape=[
            jax.ShapeDtypeStruct((B, Cout, HW_r), conv_dt),
            jax.ShapeDtypeStruct((B, n_t, Cout, 1), jnp.float32),
            jax.ShapeDtypeStruct((B, n_t, Cout, 1), jnp.float32),
        ],
        compiler_params=pltpu.CompilerParams(
            dimension_semantics=("parallel", "parallel"),
            vmem_limit_bytes=vmem_limit),
    )(x_halo, w9)

    # --- tiny cross-(batch, chunk) reduction + BN scale/shift (once) --------
    n = B * HW
    csum = jnp.sum(psum, axis=(0, 1))[:, 0]                       # (Cout,)
    csq = jnp.sum(psq, axis=(0, 1))[:, 0]
    mean = csum / n
    var = jnp.maximum(csq / n - mean * mean, 0.0)                 # biased var
    scale = gamma * jax.lax.rsqrt(var + BN_EPS)
    shift = beta - mean * scale
    sx = scale[:hid].reshape(hid, 1)
    sh = scale[hid:].reshape(hid, 1)
    sb = (shift[:hid] + shift[hid:]).reshape(hid, 1)

    # TODO(synk): for problems where B*Cout*HW fits VMEM, fuse this second pass
    # into the first pallas_call (2-phase grid, conv held in VMEM scratch) to
    # remove the conv HBM round trip entirely.
    ht_flat = pl.pallas_call(
        bn_tanh_kernel,
        grid=(B, n_t),
        in_specs=[
            pl.BlockSpec((None, Cout, tile), lambda b, t: (b, 0, t)),
            pl.BlockSpec((hid, 1), lambda b, t: (0, 0)),
            pl.BlockSpec((hid, 1), lambda b, t: (0, 0)),
            pl.BlockSpec((hid, 1), lambda b, t: (0, 0)),
        ],
        out_specs=pl.BlockSpec((None, hid, tile), lambda b, t: (b, 0, t)),
        out_shape=jax.ShapeDtypeStruct((B, hid, HW_r), jnp.float32),
        compiler_params=pltpu.CompilerParams(
            dimension_semantics=("parallel", "parallel"),
            vmem_limit_bytes=vmem_limit),
    )(conv, sx, sh, sb)

    return ht_flat[:, :, :HW].reshape(B, hid, H, W)               # already NCHW

    # TODO(synk): BatchNorm running_mean/running_var momentum update is a
    # training-state side effect, not part of the forward output; not emitted.


# ---------------------------------------------------------------------------
# Pure-JAX reference (correctness check only).
# ---------------------------------------------------------------------------
def reference(xt, state, w, bias, gamma, beta):
    hid = state.shape[1]
    x = jnp.concatenate([xt, state], axis=1)
    w_oihw = jnp.transpose(w, (3, 2, 0, 1))          # HWIO -> OIHW
    conv = jax.lax.conv_general_dilated(
        x, w_oihw, window_strides=(1, 1), padding="SAME",
        dimension_numbers=("NCHW", "OIHW", "NCHW"),
        precision=jax.lax.Precision.HIGHEST)
    conv = conv + bias[None, :, None, None]
    mean = conv.mean(axis=(0, 2, 3), keepdims=True)
    var = conv.var(axis=(0, 2, 3), keepdims=True)    # biased
    y = (conv - mean) / jnp.sqrt(var + BN_EPS)
    y = y * gamma[None, :, None, None] + beta[None, :, None, None]
    return jnp.tanh(y[:, :hid] + y[:, hid:2 * hid])


if __name__ == "__main__":
    B, in_size, hid, H, W = 2, 4, 8, 16, 16
    Cin, Cout = in_size + hid, 2 * hid

    key = jax.random.PRNGKey(0)
    k_x, k_h, k_w, k_b = jax.random.split(key, 4)

    xt = jax.random.normal(k_x, (B, in_size, H, W), jnp.float32)
    state = jax.random.normal(k_h, (B, hid, H, W), jnp.float32)

    # Conv2d(Cin, 2*hid, 3, padding=1) params (weights stored HWIO);
    # BatchNorm2d(2*hid) affine params at PyTorch defaults (gamma=1, beta=0).
    w = jax.random.normal(k_w, (3, 3, Cin, Cout), jnp.float32) * 0.1
    bias = jax.random.normal(k_b, (Cout,), jnp.float32) * 0.1
    gamma = jnp.ones((Cout,), jnp.float32)
    beta = jnp.zeros((Cout,), jnp.float32)

    # f32 path: tight tolerance against the f32 reference.
    ht32 = conv_rnn_cell(xt, state, w, bias, gamma, beta,
                         compute_dtype=jnp.float32)
    jax.block_until_ready(ht32)
    # Default perf path: bf16 MXU operands + bf16 conv intermediate.
    ht_bf = conv_rnn_cell(xt, state, w, bias, gamma, beta)
    jax.block_until_ready(ht_bf)

    ht_ref = reference(xt, state, w, bias, gamma, beta)
    assert ht32.shape == (B, hid, H, W), ht32.shape
    assert ht_bf.shape == (B, hid, H, W), ht_bf.shape
    assert jnp.allclose(ht32, ht_ref, atol=5e-3, rtol=5e-3), (
        float(jnp.max(jnp.abs(ht32 - ht_ref))))
    assert jnp.allclose(ht_bf, ht_ref, atol=3e-2, rtol=3e-2), (
        float(jnp.max(jnp.abs(ht_bf - ht_ref))))

    print("KERNEL_OK")
</pallas_src>

<mosaic_0001>
module attributes {stable_mosaic.version = 11 : i64} {
  func.func @bn_tanh_kernel(%arg0: i32, %arg1: i32, %arg2: memref<1x16x256xf32, #tpu.memory_space<vmem>>, %arg3: memref<8x1xf32, #tpu.memory_space<vmem>>, %arg4: memref<8x1xf32, #tpu.memory_space<vmem>>, %arg5: memref<8x1xf32, #tpu.memory_space<vmem>>, %arg6: memref<1x8x256xf32, #tpu.memory_space<vmem>>) attributes {dimension_semantics = [#tpu.dimension_semantics<parallel>, #tpu.dimension_semantics<parallel>], iteration_bounds = array<i64: 2, 1>, scalar_prefetch = 0 : i64, scratch_operands = 0 : i64, tpu.core_type = #tpu.core_type<tc>, window_params = [{transform_indices = @transform_0, window_bounds = array<i64: 1, 16, 256>}, {pipeline_mode = #tpu.pipeline_mode<synchronous>, transform_indices = @transform_1, window_bounds = array<i64: 8, 1>}, {pipeline_mode = #tpu.pipeline_mode<synchronous>, transform_indices = @transform_2, window_bounds = array<i64: 8, 1>}, {pipeline_mode = #tpu.pipeline_mode<synchronous>, transform_indices = @transform_3, window_bounds = array<i64: 8, 1>}, {transform_indices = @transform_4, window_bounds = array<i64: 1, 8, 256>}]} {
    %c0 = arith.constant 0 : index
    %c0_0 = arith.constant 0 : index
    %c0_1 = arith.constant 0 : index
    %0 = vector.load %arg2[%c0, %c0_0, %c0_1] : memref<1x16x256xf32, #tpu.memory_space<vmem>>, vector<1x8x256xf32>
    %1 = vector.shape_cast %0 : vector<1x8x256xf32> to vector<8x256xf32>
    %c0_2 = arith.constant 0 : index
    %c8 = arith.constant 8 : index
    %c0_3 = arith.constant 0 : index
    %2 = vector.load %arg2[%c0_2, %c8, %c0_3] : memref<1x16x256xf32, #tpu.memory_space<vmem>>, vector<1x8x256xf32>
    %3 = vector.shape_cast %2 : vector<1x8x256xf32> to vector<8x256xf32>
    %c0_4 = arith.constant 0 : index
    %c0_5 = arith.constant 0 : index
    %4 = vector.load %arg3[%c0_4, %c0_5] : memref<8x1xf32, #tpu.memory_space<vmem>>, vector<8x1xf32>
    %5 = vector.broadcast %4 : vector<8x1xf32> to vector<8x256xf32>
    %6 = arith.mulf %1, %5 : vector<8x256xf32>
    %c0_6 = arith.constant 0 : index
    %c0_7 = arith.constant 0 : index
    %7 = vector.load %arg4[%c0_6, %c0_7] : memref<8x1xf32, #tpu.memory_space<vmem>>, vector<8x1xf32>
    %8 = vector.broadcast %7 : vector<8x1xf32> to vector<8x256xf32>
    %9 = arith.mulf %3, %8 : vector<8x256xf32>
    %10 = arith.addf %6, %9 : vector<8x256xf32>
    %c0_8 = arith.constant 0 : index
    %c0_9 = arith.constant 0 : index
    %11 = vector.load %arg5[%c0_8, %c0_9] : memref<8x1xf32, #tpu.memory_space<vmem>>, vector<8x1xf32>
    %12 = vector.broadcast %11 : vector<8x1xf32> to vector<8x256xf32>
    %13 = arith.addf %10, %12 : vector<8x256xf32>
    %14 = math.tanh %13 : vector<8x256xf32>
    %c0_10 = arith.constant 0 : index
    %c0_11 = arith.constant 0 : index
    %c0_12 = arith.constant 0 : index
    %15 = vector.load %arg6[%c0_10, %c0_11, %c0_12] : memref<1x8x256xf32, #tpu.memory_space<vmem>>, vector<1x8x256xf32>
    %16 = vector.shape_cast %15 : vector<1x8x256xf32> to vector<8x256xf32>
    %17 = vector.shape_cast %14 : vector<8x256xf32> to vector<1x8x256xf32>
    tpu.vector_store %arg6[%c0_10, %c0_11, %c0_12], %17 {strides = array<i32>} : memref<1x8x256xf32, #tpu.memory_space<vmem>>, vector<1x8x256xf32>,
    return
  }
  func.func @transform_0(%arg0: i32, %arg1: i32) -> (i32, i32, i32) {
    %c0_i32 = arith.constant 0 : i32
    %c0_i32_0 = arith.constant 0 : i32
    return %arg0, %c0_i32, %arg1 : i32, i32, i32
  }
  func.func @transform_1(%arg0: i32, %arg1: i32) -> (i32, i32) {
    %c0_i32 = arith.constant 0 : i32
    %c0_i32_0 = arith.constant 0 : i32
    %c0_i32_1 = arith.constant 0 : i32
    return %c0_i32, %c0_i32_0 : i32, i32
  }
  func.func @transform_2(%arg0: i32, %arg1: i32) -> (i32, i32) {
    %c0_i32 = arith.constant 0 : i32
    %c0_i32_0 = arith.constant 0 : i32
    %c0_i32_1 = arith.constant 0 : i32
    return %c0_i32, %c0_i32_0 : i32, i32
  }
  func.func @transform_3(%arg0: i32, %arg1: i32) -> (i32, i32) {
    %c0_i32 = arith.constant 0 : i32
    %c0_i32_0 = arith.constant 0 : i32
    %c0_i32_1 = arith.constant 0 : i32
    return %c0_i32, %c0_i32_0 : i32, i32
  }
  func.func @transform_4(%arg0: i32, %arg1: i32) -> (i32, i32, i32) {
    %c0_i32 = arith.constant 0 : i32
    %c0_i32_0 = arith.constant 0 : i32
    return %arg0, %c0_i32, %arg1 : i32, i32, i32
  }
}

module attributes {stable_mosaic.version = 11 : i64} {
  func.func @conv_stats_kernel(%arg0: i32, %arg1: i32, %arg2: memref<1x1x12x290xf32, #tpu.memory_space<vmem>>, %arg3: memref<3x3x16x12xf32, #tpu.memory_space<vmem>>, %arg4: memref<1x16x256xf32, #tpu.memory_space<vmem>>, %arg5: memref<1x1x16x1xf32, #tpu.memory_space<vmem>>, %arg6: memref<1x1x16x1xf32, #tpu.memory_space<vmem>>) attributes {dimension_semantics = [#tpu.dimension_semantics<parallel>, #tpu.dimension_semantics<parallel>], iteration_bounds = array<i64: 2, 1>, scalar_prefetch = 0 : i64, scratch_operands = 0 : i64, tpu.core_type = #tpu.core_type<tc>, window_params = [{transform_indices = @transform_0, window_bounds = array<i64: 1, 1, 12, 290>}, {pipeline_mode = #tpu.pipeline_mode<synchronous>, transform_indices = @transform_1, window_bounds = array<i64: 3, 3, 16, 12>}, {transform_indices = @transform_2, window_bounds = array<i64: 1, 16, 256>}, {transform_indices = @transform_3, window_bounds = array<i64: 1, 1, 16, 1>}, {transform_indices = @transform_4, window_bounds = array<i64: 1, 1, 16, 1>}]} {
    %c0 = arith.constant 0 : index
    %c0_0 = arith.constant 0 : index
    %c0_1 = arith.constant 0 : index
    %c1 = arith.constant 1 : index
    %0 = vector.load %arg2[%c0, %c0_0, %c0_1, %c1] : memref<1x1x12x290xf32, #tpu.memory_space<vmem>>, vector<1x1x12x256xf32>
    %1 = vector.shape_cast %0 : vector<1x1x12x256xf32> to vector<12x256xf32>
    %c0_2 = arith.constant 0 : index
    %c1_3 = arith.constant 1 : index
    %c0_4 = arith.constant 0 : index
    %c0_5 = arith.constant 0 : index
    %2 = vector.load %arg3[%c0_2, %c1_3, %c0_4, %c0_5] : memref<3x3x16x12xf32, #tpu.memory_space<vmem>>, vector<1x1x16x12xf32>
    %3 = vector.shape_cast %2 : vector<1x1x16x12xf32> to vector<16x12xf32>
    %cst = arith.constant dense<0.000000e+00> : vector<16x256xf32>
    %4 = tpu.matmul %3, %1, %cst {dimension_numbers = #tpu.dot_dimension_numbers<[1], [0], [0], [1], [0, 0, 1, 1], [], []>} : vector<16x12xf32>, vector<12x256xf32>, vector<16x256xf32> -> vector<16x256xf32>
    %c0_6 = arith.constant 0 : index
    %c0_7 = arith.constant 0 : index
    %c0_8 = arith.constant 0 : index
    %c17 = arith.constant 17 : index
    %5 = vector.load %arg2[%c0_6, %c0_7, %c0_8, %c17] : memref<1x1x12x290xf32, #tpu.memory_space<vmem>>, vector<1x1x12x256xf32>
    %6 = vector.shape_cast %5 : vector<1x1x12x256xf32> to vector<12x256xf32>
    %c1_9 = arith.constant 1 : index
    %c1_10 = arith.constant 1 : index
    %c0_11 = arith.constant 0 : index
    %c0_12 = arith.constant 0 : index
    %7 = vector.load %arg3[%c1_9, %c1_10, %c0_11, %c0_12] : memref<3x3x16x12xf32, #tpu.memory_space<vmem>>, vector<1x1x16x12xf32>
    %8 = vector.shape_cast %7 : vector<1x1x16x12xf32> to vector<16x12xf32>
    %cst_13 = arith.constant dense<0.000000e+00> : vector<16x256xf32>
    %9 = tpu.matmul %8, %6, %cst_13 {dimension_numbers = #tpu.dot_dimension_numbers<[1], [0], [0], [1], [0, 0, 1, 1], [], []>} : vector<16x12xf32>, vector<12x256xf32>, vector<16x256xf32> -> vector<16x256xf32>
    %10 = arith.addf %4, %9 : vector<16x256xf32>
    %c0_14 = arith.constant 0 : index
    %c0_15 = arith.constant 0 : index
    %c0_16 = arith.constant 0 : index
    %c33 = arith.constant 33 : index
    %11 = vector.load %arg2[%c0_14, %c0_15, %c0_16, %c33] : memref<1x1x12x290xf32, #tpu.memory_space<vmem>>, vector<1x1x12x256xf32>
    %12 = vector.shape_cast %11 : vector<1x1x12x256xf32> to vector<12x256xf32>
    %c2 = arith.constant 2 : index
    %c1_17 = arith.constant 1 : index
    %c0_18 = arith.constant 0 : index
    %c0_19 = arith.constant 0 : index
    %13 = vector.load %arg3[%c2, %c1_17, %c0_18, %c0_19] : memref<3x3x16x12xf32, #tpu.memory_space<vmem>>, vector<1x1x16x12xf32>
    %14 = vector.shape_cast %13 : vector<1x1x16x12xf32> to vector<16x12xf32>
    %cst_20 = arith.constant dense<0.000000e+00> : vector<16x256xf32>
    %15 = tpu.matmul %14, %12, %cst_20 {dimension_numbers = #tpu.dot_dimension_numbers<[1], [0], [0], [1], [0, 0, 1, 1], [], []>} : vector<16x12xf32>, vector<12x256xf32>, vector<16x256xf32> -> vector<16x256xf32>
    %16 = arith.addf %10, %15 : vector<16x256xf32>
    %c0_21 = arith.constant 0 : index
    %c0_22 = arith.constant 0 : index
    %c0_23 = arith.constant 0 : index
    %c0_24 = arith.constant 0 : index
    %17 = vector.load %arg2[%c0_21, %c0_22, %c0_23, %c0_24] : memref<1x1x12x290xf32, #tpu.memory_space<vmem>>, vector<1x1x12x256xf32>
    %18 = vector.shape_cast %17 : vector<1x1x12x256xf32> to vector<12x256xf32>
    %c0_25 = arith.constant 0 : index
    %c0_26 = arith.constant 0 : index
    %c0_27 = arith.constant 0 : index
    %c0_28 = arith.constant 0 : index
    %19 = vector.load %arg3[%c0_25, %c0_26, %c0_27, %c0_28] : memref<3x3x16x12xf32, #tpu.memory_space<vmem>>, vector<1x1x16x12xf32>
    %20 = vector.shape_cast %19 : vector<1x1x16x12xf32> to vector<16x12xf32>
    %cst_29 = arith.constant dense<0.000000e+00> : vector<16x256xf32>
    %21 = tpu.matmul %20, %18, %cst_29 {dimension_numbers = #tpu.dot_dimension_numbers<[1], [0], [0], [1], [0, 0, 1, 1], [], []>} : vector<16x12xf32>, vector<12x256xf32>, vector<16x256xf32> -> vector<16x256xf32>
    %c0_30 = arith.constant 0 : index
    %c0_31 = arith.constant 0 : index
    %c0_32 = arith.constant 0 : index
    %c16 = arith.constant 16 : index
    %22 = vector.load %arg2[%c0_30, %c0_31, %c0_32, %c16] : memref<1x1x12x290xf32, #tpu.memory_space<vmem>>, vector<1x1x12x256xf32>
    %23 = vector.shape_cast %22 : vector<1x1x12x256xf32> to vector<12x256xf32>
    %c1_33 = arith.constant 1 : index
    %c0_34 = arith.constant 0 : index
    %c0_35 = arith.constant 0 : index
    %c0_36 = arith.constant 0 : index
    %24 = vector.load %arg3[%c1_33, %c0_34, %c0_35, %c0_36] : memref<3x3x16x12xf32, #tpu.memory_space<vmem>>, vector<1x1x16x12xf32>
    %25 = vector.shape_cast %24 : vector<1x1x16x12xf32> to vector<16x12xf32>
    %cst_37 = arith.constant dense<0.000000e+00> : vector<16x256xf32>
    %26 = tpu.matmul %25, %23, %cst_37 {dimension_numbers = #tpu.dot_dimension_numbers<[1], [0], [0], [1], [0, 0, 1, 1], [], []>} : vector<16x12xf32>, vector<12x256xf32>, vector<16x256xf32> -> vector<16x256xf32>
    %27 = arith.addf %21, %26 : vector<16x256xf32>
    %c0_38 = arith.constant 0 : index
    %c0_39 = arith.constant 0 : index
    %c0_40 = arith.constant 0 : index
    %c32 = arith.constant 32 : index
    %28 = vector.load %arg2[%c0_38, %c0_39, %c0_40, %c32] : memref<1x1x12x290xf32, #tpu.memory_space<vmem>>, vector<1x1x12x256xf32>
    %29 = vector.shape_cast %28 : vector<1x1x12x256xf32> to vector<12x256xf32>
    %c2_41 = arith.constant 2 : index
    %c0_42 = arith.constant 0 : index
    %c0_43 = arith.constant 0 : index
    %c0_44 = arith.constant 0 : index
    %30 = vector.load %arg3[%c2_41, %c0_42, %c0_43, %c0_44] : memref<3x3x16x12xf32, #tpu.memory_space<vmem>>, vector<1x1x16x12xf32>
    %31 = vector.shape_cast %30 : vector<1x1x16x12xf32> to vector<16x12xf32>
    %cst_45 = arith.constant dense<0.000000e+00> : vector<16x256xf32>
    %32 = tpu.matmul %31, %29, %cst_45 {dimension_numbers = #tpu.dot_dimension_numbers<[1], [0], [0], [1], [0, 0, 1, 1], [], []>} : vector<16x12xf32>, vector<12x256xf32>, vector<16x256xf32> -> vector<16x256xf32>
    %33 = arith.addf %27, %32 : vector<16x256xf32>
    %c0_46 = arith.constant 0 : index
    %c0_47 = arith.constant 0 : index
    %c0_48 = arith.constant 0 : index
    %c2_49 = arith.constant 2 : index
    %34 = vector.load %arg2[%c0_46, %c0_47, %c0_48, %c2_49] : memref<1x1x12x290xf32, #tpu.memory_space<vmem>>, vector<1x1x12x256xf32>
    %35 = vector.shape_cast %34 : vector<1x1x12x256xf32> to vector<12x256xf32>
    %c0_50 = arith.constant 0 : index
    %c2_51 = arith.constant 2 : index
    %c0_52 = arith.constant 0 : index
    %c0_53 = arith.constant 0 : index
    %36 = vector.load %arg3[%c0_50, %c2_51, %c0_52, %c0_53] : memref<3x3x16x12xf32, #tpu.memory_space<vmem>>, vector<1x1x16x12xf32>
    %37 = vector.shape_cast %36 : vector<1x1x16x12xf32> to vector<16x12xf32>
    %cst_54 = arith.constant dense<0.000000e+00> : vector<16x256xf32>
    %38 = tpu.matmul %37, %35, %cst_54 {dimension_numbers = #tpu.dot_dimension_numbers<[1], [0], [0], [1], [0, 0, 1, 1], [], []>} : vector<16x12xf32>, vector<12x256xf32>, vector<16x256xf32> -> vector<16x256xf32>
    %c0_55 = arith.constant 0 : index
    %c0_56 = arith.constant 0 : index
    %c0_57 = arith.constant 0 : index
    %c18 = arith.constant 18 : index
    %39 = vector.load %arg2[%c0_55, %c0_56, %c0_57, %c18] : memref<1x1x12x290xf32, #tpu.memory_space<vmem>>, vector<1x1x12x256xf32>
    %40 = vector.shape_cast %39 : vector<1x1x12x256xf32> to vector<12x256xf32>
    %c1_58 = arith.constant 1 : index
    %c2_59 = arith.constant 2 : index
    %c0_60 = arith.constant 0 : index
    %c0_61 = arith.constant 0 : index
    %41 = vector.load %arg3[%c1_58, %c2_59, %c0_60, %c0_61] : memref<3x3x16x12xf32, #tpu.memory_space<vmem>>, vector<1x1x16x12xf32>
    %42 = vector.shape_cast %41 : vector<1x1x16x12xf32> to vector<16x12xf32>
    %cst_62 = arith.constant dense<0.000000e+00> : vector<16x256xf32>
    %43 = tpu.matmul %42, %40, %cst_62 {dimension_numbers = #tpu.dot_dimension_numbers<[1], [0], [0], [1], [0, 0, 1, 1], [], []>} : vector<16x12xf32>, vector<12x256xf32>, vector<16x256xf32> -> vector<16x256xf32>
    %44 = arith.addf %38, %43 : vector<16x256xf32>
    %c0_63 = arith.constant 0 : index
    %c0_64 = arith.constant 0 : index
    %c0_65 = arith.constant 0 : index
    %c34 = arith.constant 34 : index
    %45 = vector.load %arg2[%c0_63, %c0_64, %c0_65, %c34] : memref<1x1x12x290xf32, #tpu.memory_space<vmem>>, vector<1x1x12x256xf32>
    %46 = vector.shape_cast %45 : vector<1x1x12x256xf32> to vector<12x256xf32>
    %c2_66 = arith.constant 2 : index
    %c2_67 = arith.constant 2 : index
    %c0_68 = arith.constant 0 : index
    %c0_69 = arith.constant 0 : index
    %47 = vector.load %arg3[%c2_66, %c2_67, %c0_68, %c0_69] : memref<3x3x16x12xf32, #tpu.memory_space<vmem>>, vector<1x1x16x12xf32>
    %48 = vector.shape_cast %47 : vector<1x1x16x12xf32> to vector<16x12xf32>
    %cst_70 = arith.constant dense<0.000000e+00> : vector<16x256xf32>
    %49 = tpu.matmul %48, %46, %cst_70 {dimension_numbers = #tpu.dot_dimension_numbers<[1], [0], [0], [1], [0, 0, 1, 1], [], []>} : vector<16x12xf32>, vector<12x256xf32>, vector<16x256xf32> -> vector<16x256xf32>
    %50 = arith.addf %44, %49 : vector<16x256xf32>
    %c256_i32 = arith.constant 256 : i32
    %51 = arith.muli %arg1, %c256_i32 : i32
    %52 = tpu.iota {dimensions = array<i32: 1>} : vector<1x256xi32>
    %53 = vector.broadcast %51 : i32 to vector<1x256xi32>
    %54 = arith.addi %53, %52 : vector<1x256xi32>
    %c16_i32 = arith.constant 16 : i32
    %c0_i32 = arith.constant 0 : i32
    %55 = arith.cmpi eq, %c16_i32, %c0_i32 : i32
    %c1_i32 = arith.constant 1 : i32
    %56 = arith.select %55, %c1_i32, %c16_i32 : i32
    %57 = vector.broadcast %56 : i32 to vector<1x256xi32>
    %58 = arith.remsi %54, %57 : vector<1x256xi32>
    %c0_i32_71 = arith.constant 0 : i32
    %59 = vector.broadcast %c0_i32_71 : i32 to vector<1x256xi32>
    %60 = arith.cmpi ne, %58, %59 : vector<1x256xi32>
    %c0_i32_72 = arith.constant 0 : i32
    %61 = vector.broadcast %c0_i32_72 : i32 to vector<1x256xi32>
    %62 = arith.cmpi slt, %58, %61 : vector<1x256xi32>
    %c0_i32_73 = arith.constant 0 : i32
    %63 = arith.cmpi slt, %56, %c0_i32_73 : i32
    %64 = vector.broadcast %63 : i1 to vector<1x256xi1>
    %65 = vector.broadcast %64 : vector<1x256xi1> to vector<1x256xi1>
    %66 = arith.xori %62, %65 : vector<1x256xi1>
    %67 = arith.andi %66, %60 : vector<1x256xi1>
    %68 = vector.broadcast %56 : i32 to vector<1x256xi32>
    %69 = arith.addi %58, %68 : vector<1x256xi32>
    %70 = arith.select %67, %69, %58 : vector<1x256xi1>, vector<1x256xi32>
    %c0_i32_74 = arith.constant 0 : i32
    %71 = vector.broadcast %c0_i32_74 : i32 to vector<1x256xi32>
    %72 = arith.cmpi ne, %70, %71 : vector<1x256xi32>
    %cst_75 = arith.constant 0.000000e+00 : f32
    %73 = vector.shape_cast %72 : vector<1x256xi1> to vector<1x256xi1>
    %74 = vector.broadcast %73 : vector<1x256xi1> to vector<16x256xi1>
    %75 = vector.broadcast %cst_75 : f32 to vector<16x256xf32>
    %76 = arith.select %74, %33, %75 : vector<16x256xi1>, vector<16x256xf32>
    %77 = arith.addf %16, %76 : vector<16x256xf32>
    %c15_i32 = arith.constant 15 : i32
    %78 = vector.broadcast %c15_i32 : i32 to vector<1x256xi32>
    %79 = arith.cmpi ne, %70, %78 : vector<1x256xi32>
    %cst_76 = arith.constant 0.000000e+00 : f32
    %80 = vector.shape_cast %79 : vector<1x256xi1> to vector<1x256xi1>
    %81 = vector.broadcast %80 : vector<1x256xi1> to vector<16x256xi1>
    %82 = vector.broadcast %cst_76 : f32 to vector<16x256xf32>
    %83 = arith.select %81, %50, %82 : vector<16x256xi1>, vector<16x256xf32>
    %84 = arith.addf %77, %83 : vector<16x256xf32>
    %c0_77 = arith.constant 0 : index
    %c0_78 = arith.constant 0 : index
    %c0_79 = arith.constant 0 : index
    %85 = vector.load %arg4[%c0_77, %c0_78, %c0_79] : memref<1x16x256xf32, #tpu.memory_space<vmem>>, vector<1x16x256xf32>
    %86 = vector.shape_cast %85 : vector<1x16x256xf32> to vector<16x256xf32>
    %87 = vector.shape_cast %84 : vector<16x256xf32> to vector<1x16x256xf32>
    tpu.vector_store %arg4[%c0_77, %c0_78, %c0_79], %87 {strides = array<i32>} : memref<1x16x256xf32, #tpu.memory_space<vmem>>, vector<1x16x256xf32>,
    %cst_80 = arith.constant dense<0.000000e+00> : vector<16xf32>
    %88 = vector.multi_reduction <add>, %84, %cst_80 [1] : vector<16x256xf32> to vector<16xf32>
    %89 = vector.shape_cast %88 : vector<16xf32> to vector<16x1xf32>
    %c0_81 = arith.constant 0 : index
    %c0_82 = arith.constant 0 : index
    %c0_83 = arith.constant 0 : index
    %c0_84 = arith.constant 0 : index
    %90 = vector.load %arg5[%c0_81, %c0_82, %c0_83, %c0_84] : memref<1x1x16x1xf32, #tpu.memory_space<vmem>>, vector<1x1x16x1xf32>
    %91 = vector.shape_cast %90 : vector<1x1x16x1xf32> to vector<16x1xf32>
    %92 = vector.shape_cast %89 : vector<16x1xf32> to vector<1x1x16x1xf32>
    tpu.vector_store %arg5[%c0_81, %c0_82, %c0_83, %c0_84], %92 {strides = array<i32>} : memref<1x1x16x1xf32, #tpu.memory_space<vmem>>, vector<1x1x16x1xf32>,
    %93 = arith.mulf %84, %84 : vector<16x256xf32>
    %cst_85 = arith.constant dense<0.000000e+00> : vector<16xf32>
    %94 = vector.multi_reduction <add>, %93, %cst_85 [1] : vector<16x256xf32> to vector<16xf32>
    %95 = vector.shape_cast %94 : vector<16xf32> to vector<16x1xf32>
    %c0_86 = arith.constant 0 : index
    %c0_87 = arith.constant 0 : index
    %c0_88 = arith.constant 0 : index
    %c0_89 = arith.constant 0 : index
    %96 = vector.load %arg6[%c0_86, %c0_87, %c0_88, %c0_89] : memref<1x1x16x1xf32, #tpu.memory_space<vmem>>, vector<1x1x16x1xf32>
    %97 = vector.shape_cast %96 : vector<1x1x16x1xf32> to vector<16x1xf32>
    %98 = vector.shape_cast %95 : vector<16x1xf32> to vector<1x1x16x1xf32>
    tpu.vector_store %arg6[%c0_86, %c0_87, %c0_88, %c0_89], %98 {strides = array<i32>} : memref<1x1x16x1xf32, #tpu.memory_space<vmem>>, vector<1x1x16x1xf32>,
    return
  }
  func.func @transform_0(%arg0: i32, %arg1: i32) -> (i32, i32, i32, i32) {
    %c0_i32 = arith.constant 0 : i32
    %c0_i32_0 = arith.constant 0 : i32
    %c0_i32_1 = arith.constant 0 : i32
    return %arg0, %arg1, %c0_i32, %c0_i32_0 : i32, i32, i32, i32
  }
  func.func @transform_1(%arg0: i32, %arg1: i32) -> (i32, i32, i32, i32) {
    %c0_i32 = arith.constant 0 : i32
    %c0_i32_0 = arith.constant 0 : i32
    %c0_i32_1 = arith.constant 0 : i32
    %c0_i32_2 = arith.constant 0 : i32
    %c0_i32_3 = arith.constant 0 : i32
    return %c0_i32, %c0_i32_0, %c0_i32_1, %c0_i32_2 : i32, i32, i32, i32
  }
  func.func @transform_2(%arg0: i32, %arg1: i32) -> (i32, i32, i32) {
    %c0_i32 = arith.constant 0 : i32
    %c0_i32_0 = arith.constant 0 : i32
    return %arg0, %c0_i32, %arg1 : i32, i32, i32
  }
  func.func @transform_3(%arg0: i32, %arg1: i32) -> (i32, i32, i32, i32) {
    %c0_i32 = arith.constant 0 : i32
    %c0_i32_0 = arith.constant 0 : i32
    %c0_i32_1 = arith.constant 0 : i32
    return %arg0, %arg1, %c0_i32, %c0_i32_0 : i32, i32, i32, i32
  }
  func.func @transform_4(%arg0: i32, %arg1: i32) -> (i32, i32, i32, i32) {
    %c0_i32 = arith.constant 0 : i32
    %c0_i32_0 = arith.constant 0 : i32
    %c0_i32_1 = arith.constant 0 : i32
    return %arg0, %arg1, %c0_i32, %c0_i32_0 : i32, i32, i32, i32
  }
}

</mosaic_0001>

<llo_original>
// kernel: conv_rnn_cell.3
$region0: #{conv_rnn_cell.3}
  #allocation0 [shape = 'u32[]', space=smem, size = 0x4, offset = 0x4, fixed_abs, tag = 'smem constant byte address 0x4 - core index']
  #allocation1 [shape = 'u32[72,128]{1,0:T(1,128)}', space=vmem, size = 0x9000, scoped, tag = 'internal scratch']
  %s0 = inlined_call_operand.vmem [shape: f32[2,16,256], index: 0, kind: input, shape index: {}]
  %s1 = inlined_call_operand.vmem [shape: f32[8,1], index: 1, kind: input, shape index: {}]
  %s2 = inlined_call_operand.vmem [shape: f32[8,1], index: 2, kind: input, shape index: {}]
  %s3 = inlined_call_operand.vmem [shape: f32[8,1], index: 3, kind: input, shape index: {}]
  %s4 = inlined_call_operand.vmem [shape: f32[2,8,256], index: 4, kind: output, shape index: {}]
  %s5 = sld [smem:[#allocation0]]
  $region49: #{conv_rnn_cell.3} parent=0
    _
  %s7 = ssub.s32 1, %s5
  %s8 = scalar_select 0, %s7, %s5
  loop: start=0, step=1, limit=4
  $region2: #{conv_rnn_cell.3} parent=0 // loop_pre_header
    _
  $region3: #{conv_rnn_cell.3} parent=0 // loop_header
    %s10 = sphi 0, %s14
    %p11 = scmp.ge.s32.totalorder %s10, 4
    %s17 = sphi 0, %s29
    %s18 = sphi 0, %s25
    %s19 = sphi 0, %s17
    %s20 = sphi 0, %s18
    %s21 = sphi 0, %s19
    %s22 = sphi 0, %s20
    %s34 = sphi 0, %s36
    %s37 = sphi 0, %s34
    %s38 = sphi 0, %s37
    %s54 = sphi 0, %s38
    %s58 = sphi 0, %s58
    %s60 = sphi 0, %s58
    %s61 = sphi 0, %s60
    %s75 = sphi 0, %s61
    %s79 = sphi 0, %s79
    %s81 = sphi 0, %s79
    %s82 = sphi 0, %s81
    %s96 = sphi 0, %s82
    %s100 = sphi 0, %s100
    %s102 = sphi 0, %s100
    %s103 = sphi 0, %s102
    %s117 = sphi 0, %s103
    %s125 = sphi 0, %s127
    %s128 = sphi 0, %s125
    %s129 = sphi 0, %s128
    %s145 = sphi 0, %s129
  $region4: #{conv_rnn_cell.3} parent=0 // loop_header_branch
    %13 = sbr.rel (%p11) target = $region8
  $region5: #{conv_rnn_cell.3} parent=0 // loop_body
    %s15 = ssub.s32 %s10, 1
    %s16 = ssub.s32 %s10, 2
    %s23 = sadd.s32 1, %s18
    %p24 = scmp.ge.s32.totalorder %s23, 1
    %s25 = scalar_select %p24, 0, %s23
    %s26 = sadd.s32 1, %s17
    %s27 = scalar_select %p24, %s26, %s17
    %p28 = scmp.ge.s32.totalorder %s27, 2
    %s29 = scalar_select %p28, 0, %s27
    %s30 = ssub.s32 %s17, %s29
    %s31 = ssub.s32 %s18, %s25
    %s32 = sor.u32 %s30, %s31
    %p33 = scmp.eq.s32.totalorder %s32, 0
    %s35 = sadd.s32 %s34, 1
    %s36 = scalar_select %p33, %s34, %s35
    %p39 = pneg %p33
    %p40 = scmp.eq.s32.totalorder %s10, 1
    %p41 = por %p39, %p40
    %p42 = scmp.ne.s32.totalorder %s34, %s37
    %p43 = scmp.eq.s32.totalorder %s10, 0
    %p44 = por %p42, %p43
    %p45 = scmp.ne.s32.totalorder %s34, %s37
    %p46 = scmp.eq.s32.totalorder %s15, 1
    %p47 = por %p45, %p46
    %p48 = scmp.ne.s32.totalorder %s37, %s38
    %p49 = scmp.eq.s32.totalorder %s15, 0
    %p50 = por %p48, %p49
    %p51 = scmp.ne.s32.totalorder %s37, %s38
    %p52 = scmp.eq.s32.totalorder %s16, 1
    %p53 = por %p51, %p52
    %p55 = scmp.ne.s32.totalorder %s38, %s54
    %p56 = scmp.eq.s32.totalorder %s16, 0
    %p57 = por %p55, %p56
    %s59 = sadd.s32 %s58, 1
    %p62 = scmp.eq.s32.totalorder %s10, 1
    %p63 = scmp.ne.s32.totalorder %s58, %s60
    %p64 = scmp.eq.s32.totalorder %s10, 0
    %p65 = por %p63, %p64
    %p66 = scmp.ne.s32.totalorder %s58, %s60
    %p67 = scmp.eq.s32.totalorder %s15, 1
    %p68 = por %p66, %p67
    %p69 = scmp.ne.s32.totalorder %s60, %s61
    %p70 = scmp.eq.s32.totalorder %s15, 0
    %p71 = por %p69, %p70
    %p72 = scmp.ne.s32.totalorder %s60, %s61
    %p73 = scmp.eq.s32.totalorder %s16, 1
    %p74 = por %p72, %p73
    %p76 = scmp.ne.s32.totalorder %s61, %s75
    %p77 = scmp.eq.s32.totalorder %s16, 0
    %p78 = por %p76, %p77
    %s80 = sadd.s32 %s79, 1
    %p83 = scmp.eq.s32.totalorder %s10, 1
    %p84 = scmp.ne.s32.totalorder %s79, %s81
    %p85 = scmp.eq.s32.totalorder %s10, 0
    %p86 = por %p84, %p85
    %p87 = scmp.ne.s32.totalorder %s79, %s81
    %p88 = scmp.eq.s32.totalorder %s15, 1
    %p89 = por %p87, %p88
    %p90 = scmp.ne.s32.totalorder %s81, %s82
    %p91 = scmp.eq.s32.totalorder %s15, 0
    %p92 = por %p90, %p91
    %p93 = scmp.ne.s32.totalorder %s81, %s82
    %p94 = scmp.eq.s32.totalorder %s16, 1
    %p95 = por %p93, %p94
    %p97 = scmp.ne.s32.totalorder %s82, %s96
    %p98 = scmp.eq.s32.totalorder %s16, 0
    %p99 = por %p97, %p98
    %s101 = sadd.s32 %s100, 1
    %p104 = scmp.eq.s32.totalorder %s10, 1
    %p105 = scmp.ne.s32.totalorder %s100, %s102
    %p106 = scmp.eq.s32.totalorder %s10, 0
    %p107 = por %p105, %p106
    %p108 = scmp.ne.s32.totalorder %s100, %s102
    %p109 = scmp.eq.s32.totalorder %s15, 1
    %p110 = por %p108, %p109
    %p111 = scmp.ne.s32.totalorder %s102, %s103
    %p112 = scmp.eq.s32.totalorder %s15, 0
    %p113 = por %p111, %p112
    %p114 = scmp.ne.s32.totalorder %s102, %s103
    %p115 = scmp.eq.s32.totalorder %s16, 1
    %p116 = por %p114, %p115
    %p118 = scmp.ne.s32.totalorder %s103, %s117
    %p119 = scmp.eq.s32.totalorder %s16, 0
    %p120 = por %p118, %p119
    %s121 = ssub.s32 %s17, %s29
    %s122 = ssub.s32 %s18, %s25
    %s123 = sor.u32 %s121, %s122
    %p124 = scmp.eq.s32.totalorder %s123, 0
    %s126 = sadd.s32 %s125, 1
    %s127 = scalar_select %p124, %s125, %s126
    %p130 = pneg %p124
    %p131 = scmp.eq.s32.totalorder %s10, 1
    %p132 = por %p130, %p131
    %p133 = scmp.ne.s32.totalorder %s125, %s128
    %p134 = scmp.eq.s32.totalorder %s10, 0
    %p135 = por %p133, %p134
    %p136 = scmp.ne.s32.totalorder %s125, %s128
    %p137 = scmp.eq.s32.totalorder %s15, 1
    %p138 = por %p136, %p137
    %p139 = scmp.ne.s32.totalorder %s128, %s129
    %p140 = scmp.eq.s32.totalorder %s15, 0
    %p141 = por %p139, %p140
    %p142 = scmp.ne.s32.totalorder %s128, %s129
    %p143 = scmp.eq.s32.totalorder %s16, 1
    %p144 = por %p142, %p143
    %p146 = scmp.ne.s32.totalorder %s129, %s145
    %p147 = scmp.eq.s32.totalorder %s16, 0
    %p148 = por %p146, %p147
    %p149 = scmp.le.s32.totalorder 1, %s10
    %p150 = scmp.lt.s32.totalorder %s10, 3
    %p151 = pnand %p149, %p150
    %p152 = pneg %p151
    // Predicated region
    $region9: #{conv_rnn_cell.3} parent=5 // pred_check
      _
    $region10: #{conv_rnn_cell.3} parent=5 // pred_check_branch
      %154 = sbr.rel (%p151) target = $region12
    $region11: #{conv_rnn_cell.3} parent=5 // pred_region
      %s155 = ssub.s32 %s10, 1
      // Predicated region
      $region13: #{conv_rnn_cell.3} parent=11 // pred_check
        %p156 = pneg %p71
      $region14: #{conv_rnn_cell.3} parent=11 // pred_check_branch
        %158 = sbr.rel (%p156) target = $region16
      $region15: #{conv_rnn_cell.3} parent=11 // pred_region
        _
      $region16: #{conv_rnn_cell.3} parent=11 // pred_fallthru
        _
      // Predicated region
      $region17: #{conv_rnn_cell.3} parent=11 // pred_check
        %p159 = pneg %p92
      $region18: #{conv_rnn_cell.3} parent=11 // pred_check_branch
        %161 = sbr.rel (%p159) target = $region20
      $region19: #{conv_rnn_cell.3} parent=11 // pred_region
        _
      $region20: #{conv_rnn_cell.3} parent=11 // pred_fallthru
        _
      // Predicated region
      $region21: #{conv_rnn_cell.3} parent=11 // pred_check
        %p162 = pneg %p113
      $region22: #{conv_rnn_cell.3} parent=11 // pred_check_branch
        %164 = sbr.rel (%p162) target = $region24
      $region23: #{conv_rnn_cell.3} parent=11 // pred_region
        _
      $region24: #{conv_rnn_cell.3} parent=11 // pred_fallthru
        _
    $region12: #{conv_rnn_cell.3} parent=5 // pred_fallthru
      _
    %p165 = scmp.lt.s32.totalorder %s10, 2
    // Predicated region
    $region25: #{conv_rnn_cell.3} parent=5 // pred_check
      %p166 = pneg %p165
    $region26: #{conv_rnn_cell.3} parent=5 // pred_check_branch
      %168 = sbr.rel (%p166) target = $region28
    $region27: #{conv_rnn_cell.3} parent=5 // pred_region
      // Predicated region
      $region29: #{conv_rnn_cell.3} parent=27 // pred_check
        %p169 = pneg %p44
      $region30: #{conv_rnn_cell.3} parent=27 // pred_check_branch
        %171 = sbr.rel (%p169) target = $region32
      $region31: #{conv_rnn_cell.3} parent=27 // pred_region
        %s172 = smul.u32 2, %s18
        %p173 = scmp.lt.s32.totalorder %s17, 1
        %s174 = scalar_select %p173, %s17, 1
        %p175 = scmp.lt.s32.totalorder %s172, 1
        %s176 = scalar_select %p175, %s172, 1
        %s177 = smul.addr %s174, 4
        %s178 = sadd.s32 %s176, %s177
        %s179 = smul.addr %s178, 8
        %s180 = scalar_lea.vmem %s0, %s179
        %s181 = smul.u32 2, %s18
      $region32: #{conv_rnn_cell.3} parent=27 // pred_fallthru
        _
    $region28: #{conv_rnn_cell.3} parent=5 // pred_fallthru
      _
    %p182 = scmp.le.s32.totalorder 1, %s10
    %p183 = scmp.lt.s32.totalorder %s10, 3
    %p184 = pnand %p182, %p183
    %p185 = pneg %p184
    // Predicated region
    $region33: #{conv_rnn_cell.3} parent=5 // pred_check
      _
    $region34: #{conv_rnn_cell.3} parent=5 // pred_check_branch
      %187 = sbr.rel (%p184) target = $region36
    $region35: #{conv_rnn_cell.3} parent=5 // pred_region
      %s188 = ssub.s32 %s10, 1
      %s189 = smul.u32 2, %s20
      %p190 = scmp.lt.s32.totalorder %s19, 1
      %s191 = scalar_select %p190, %s19, 1
      %p192 = scmp.lt.s32.totalorder %s189, 1
      %s193 = scalar_select %p192, %s189, 1
      %s194 = smul.addr %s191, 4
      %s195 = sadd.s32 %s193, %s194
      %s196 = smul.addr %s195, 8
      %s197 = scalar_lea.vmem %s0, %s196
      %p198 = pneg %p50
      %p199 = pneg %p47
      %p200 = pneg %p71
      %p201 = pneg %p68
      %p202 = pneg %p92
      %p203 = pneg %p89
      %p204 = pneg %p113
      %p205 = pneg %p110
      %p206 = pneg %p141
      %p207 = pneg %p138
      %s208 = smul.u32 2, %s20
      %p209 = scmp.lt.s32.totalorder %s19, 1
      %s210 = scalar_select %p209, %s19, 1
      %p211 = scmp.lt.s32.totalorder %s208, 1
      %s212 = scalar_select %p211, %s208, 1
      %s213 = smul.addr %s210, 2
      %s214 = sadd.s32 %s212, %s213
      %s215 = smul.addr %s214, 8
      %s216 = scalar_lea.vmem %s4, %s215
      %s217 = smul.u32 2, %s20
      %p218 = scmp.lt.s32.totalorder %s19, 1
      %s219 = scalar_select %p218, %s19, 1
      %p220 = scmp.lt.s32.totalorder %s217, 1
      %s221 = scalar_select %p220, %s217, 1
      %s222 = smul.addr %s219, 4
      %s223 = sadd.s32 %s221, %s222
      %s224 = smul.addr %s223, 8
      %s225 = scalar_lea.vmem %s0, %s224
      %s226 = smul.u32 2, %s20
      %s227 = smul.u32 2, %s20
      %p228 = scmp.lt.s32.totalorder %s19, 1
      %s229 = scalar_select %p228, %s19, 1
      %p230 = scmp.lt.s32.totalorder %s227, 1
      %s231 = scalar_select %p230, %s227, 1
      %s232 = smul.addr %s229, 2
      %s233 = sadd.s32 %s231, %s232
      %s234 = smul.addr %s233, 8
      %s235 = scalar_lea.vmem %s4, %s234
      %s236 = smul.u32 2, %s20
      %v237 = vld [vmem:[%s225] sm:$0xff]
      %v238 = vld [vmem:[%s225 + $0x8] sm:$0xff]
      %v239 = vld [vmem:[%s225 + $0x10] sm:$0xff]
      %v240 = vld [vmem:[%s225 + $0x18] sm:$0xff]
      %v241 = vld [vmem:[%s1] sm:$0xff]
      %243 = vset.pattern.permute.xlu0 0
      %244 = vperm.xlu0 %243, %v241
      %v245 = vpop.permute.xlu0 %244
      %v247 = vmul.f32 %v237, %v245
      %v248 = vmul.f32 %v238, %v245
      %v249 = vld [vmem:[%s2] sm:$0xff]
      %251 = vset.pattern.permute.xlu0 0
      %252 = vperm.xlu0 %251, %v249
      %v253 = vpop.permute.xlu0 %252
      %v255 = vmul.f32 %v239, %v253
      %v256 = vmul.f32 %v240, %v253
      %v257 = vadd.f32 %v247, %v255
      %v258 = vadd.f32 %v248, %v256
      %v259 = vld [vmem:[%s3] sm:$0xff]
      %261 = vset.pattern.permute.xlu0 0
      %262 = vperm.xlu0 %261, %v259
      %v263 = vpop.permute.xlu0 %262
      %v265 = vadd.f32 %v257, %v263
      %v266 = vadd.f32 %v258, %v263
      %v267 = vtanh.pop %v265
      %v268 = vtanh.pop %v266
      %269 = vst [vmem:[%s235] sm:$0xff] %v267
      %270 = vst [vmem:[%s235 + $0x8] sm:$0xff] %v268
      %s271 = smul.u32 2, %s20
      %p272 = scmp.lt.s32.totalorder %s19, 1
      %s273 = scalar_select %p272, %s19, 1
      %p274 = scmp.lt.s32.totalorder %s271, 1
      %s275 = scalar_select %p274, %s271, 1
      %s276 = smul.addr %s273, 2
      %s277 = sadd.s32 %s275, %s276
      %s278 = smul.addr %s277, 8
      %s279 = scalar_lea.vmem %s4, %s278
      // Predicated region
      $region37: #{conv_rnn_cell.3} parent=35 // pred_check
        %p280 = pneg %p138
      $region38: #{conv_rnn_cell.3} parent=35 // pred_check_branch
        %282 = sbr.rel (%p280) target = $region40
      $region39: #{conv_rnn_cell.3} parent=35 // pred_region
        %s283 = smul.u32 2, %s20
      $region40: #{conv_rnn_cell.3} parent=35 // pred_fallthru
        _
    $region36: #{conv_rnn_cell.3} parent=5 // pred_fallthru
      _
    %p284 = scmp.le.s32.totalorder 2, %s10
    // Predicated region
    $region41: #{conv_rnn_cell.3} parent=5 // pred_check
      %p285 = pneg %p284
    $region42: #{conv_rnn_cell.3} parent=5 // pred_check_branch
      %287 = sbr.rel (%p285) target = $region44
    $region43: #{conv_rnn_cell.3} parent=5 // pred_region
      %s288 = ssub.s32 %s10, 2
      // Predicated region
      $region45: #{conv_rnn_cell.3} parent=43 // pred_check
        %p289 = pneg %p144
      $region46: #{conv_rnn_cell.3} parent=43 // pred_check_branch
        %291 = sbr.rel (%p289) target = $region48
      $region47: #{conv_rnn_cell.3} parent=43 // pred_region
        %s292 = smul.u32 2, %s22
        %p293 = scmp.lt.s32.totalorder %s21, 1
        %s294 = scalar_select %p293, %s21, 1
        %p295 = scmp.lt.s32.totalorder %s292, 1
        %s296 = scalar_select %p295, %s292, 1
        %s297 = smul.addr %s294, 2
        %s298 = sadd.s32 %s296, %s297
        %s299 = smul.addr %s298, 8
        %s300 = scalar_lea.vmem %s4, %s299
      $region48: #{conv_rnn_cell.3} parent=43 // pred_fallthru
        _
    $region44: #{conv_rnn_cell.3} parent=5 // pred_fallthru
      _
  $region6: #{conv_rnn_cell.3} parent=0 // loop_footer
    %s14 = sadd.s32 1, %s10
  $region7: #{conv_rnn_cell.3} parent=0 // loop_footer_branch
    %9 = sbr.rel target = $region3
  $region8: #{conv_rnn_cell.3} parent=0 // loop_exit
    _

// kernel: conv_rnn_cell.2
$region0: #{conv_rnn_cell.2}
  #allocation0 [shape = 'u32[]', space=smem, size = 0x4, offset = 0x4, fixed_abs, tag = 'smem constant byte address 0x4 - core index']
  #allocation1 [shape = 'u32[72,128]{1,0:T(1,128)}', space=vmem, size = 0x9000, scoped, tag = 'internal scratch']
  %s0 = inlined_call_operand.vmem [shape: f32[2,1,12,290], index: 0, kind: input, shape index: {}]
  %s1 = inlined_call_operand.vmem [shape: f32[3,3,16,12], index: 1, kind: input, shape index: {}]
  %s2 = inlined_call_operand.vmem [shape: f32[2,16,256], index: 2, kind: output, shape index: {0}]
  %s3 = inlined_call_operand.vmem [shape: f32[2,1,16,1], index: 3, kind: output, shape index: {1}]
  %s4 = inlined_call_operand.vmem [shape: f32[2,1,16,1], index: 4, kind: output, shape index: {2}]
  %5 = xla_tuple %s2, %s3, %s4
  %s6 = sld [smem:[#allocation0]]
  $region57: #{conv_rnn_cell.2} parent=0
    _
  %s8 = ssub.s32 1, %s6
  %s9 = scalar_select 0, %s8, %s6
  loop: start=0, step=1, limit=4
  $region2: #{conv_rnn_cell.2} parent=0 // loop_pre_header
    _
  $region3: #{conv_rnn_cell.2} parent=0 // loop_header
    %s11 = sphi 0, %s15
    %p12 = scmp.ge.s32.totalorder %s11, 4
    %s18 = sphi 0, %s30
    %s19 = sphi 0, %s26
    %s20 = sphi 0, %s18
    %s21 = sphi 0, %s19
    %s22 = sphi 0, %s20
    %s23 = sphi 0, %s21
    %s35 = sphi 0, %s37
    %s38 = sphi 0, %s35
    %s39 = sphi 0, %s38
    %s55 = sphi 0, %s39
    %s59 = sphi 0, %s59
    %s61 = sphi 0, %s59
    %s62 = sphi 0, %s61
    %s76 = sphi 0, %s62
    %s84 = sphi 0, %s86
    %s87 = sphi 0, %s84
    %s88 = sphi 0, %s87
    %s104 = sphi 0, %s88
    %s112 = sphi 0, %s114
    %s115 = sphi 0, %s112
    %s116 = sphi 0, %s115
    %s132 = sphi 0, %s116
    %s140 = sphi 0, %s142
    %s143 = sphi 0, %s140
    %s144 = sphi 0, %s143
    %s160 = sphi 0, %s144
  $region4: #{conv_rnn_cell.2} parent=0 // loop_header_branch
    %14 = sbr.rel (%p12) target = $region8
  $region5: #{conv_rnn_cell.2} parent=0 // loop_body
    %s16 = ssub.s32 %s11, 1
    %s17 = ssub.s32 %s11, 2
    %s24 = sadd.s32 1, %s19
    %p25 = scmp.ge.s32.totalorder %s24, 1
    %s26 = scalar_select %p25, 0, %s24
    %s27 = sadd.s32 1, %s18
    %s28 = scalar_select %p25, %s27, %s18
    %p29 = scmp.ge.s32.totalorder %s28, 2
    %s30 = scalar_select %p29, 0, %s28
    %s31 = ssub.s32 %s18, %s30
    %s32 = ssub.s32 %s19, %s26
    %s33 = sor.u32 %s31, %s32
    %p34 = scmp.eq.s32.totalorder %s33, 0
    %s36 = sadd.s32 %s35, 1
    %s37 = scalar_select %p34, %s35, %s36
    %p40 = pneg %p34
    %p41 = scmp.eq.s32.totalorder %s11, 1
    %p42 = por %p40, %p41
    %p43 = scmp.ne.s32.totalorder %s35, %s38
    %p44 = scmp.eq.s32.totalorder %s11, 0
    %p45 = por %p43, %p44
    %p46 = scmp.ne.s32.totalorder %s35, %s38
    %p47 = scmp.eq.s32.totalorder %s16, 1
    %p48 = por %p46, %p47
    %p49 = scmp.ne.s32.totalorder %s38, %s39
    %p50 = scmp.eq.s32.totalorder %s16, 0
    %p51 = por %p49, %p50
    %p52 = scmp.ne.s32.totalorder %s38, %s39
    %p53 = scmp.eq.s32.totalorder %s17, 1
    %p54 = por %p52, %p53
    %p56 = scmp.ne.s32.totalorder %s39, %s55
    %p57 = scmp.eq.s32.totalorder %s17, 0
    %p58 = por %p56, %p57
    %s60 = sadd.s32 %s59, 1
    %p63 = scmp.eq.s32.totalorder %s11, 1
    %p64 = scmp.ne.s32.totalorder %s59, %s61
    %p65 = scmp.eq.s32.totalorder %s11, 0
    %p66 = por %p64, %p65
    %p67 = scmp.ne.s32.totalorder %s59, %s61
    %p68 = scmp.eq.s32.totalorder %s16, 1
    %p69 = por %p67, %p68
    %p70 = scmp.ne.s32.totalorder %s61, %s62
    %p71 = scmp.eq.s32.totalorder %s16, 0
    %p72 = por %p70, %p71
    %p73 = scmp.ne.s32.totalorder %s61, %s62
    %p74 = scmp.eq.s32.totalorder %s17, 1
    %p75 = por %p73, %p74
    %p77 = scmp.ne.s32.totalorder %s62, %s76
    %p78 = scmp.eq.s32.totalorder %s17, 0
    %p79 = por %p77, %p78
    %s80 = ssub.s32 %s18, %s30
    %s81 = ssub.s32 %s19, %s26
    %s82 = sor.u32 %s80, %s81
    %p83 = scmp.eq.s32.totalorder %s82, 0
    %s85 = sadd.s32 %s84, 1
    %s86 = scalar_select %p83, %s84, %s85
    %p89 = pneg %p83
    %p90 = scmp.eq.s32.totalorder %s11, 1
    %p91 = por %p89, %p90
    %p92 = scmp.ne.s32.totalorder %s84, %s87
    %p93 = scmp.eq.s32.totalorder %s11, 0
    %p94 = por %p92, %p93
    %p95 = scmp.ne.s32.totalorder %s84, %s87
    %p96 = scmp.eq.s32.totalorder %s16, 1
    %p97 = por %p95, %p96
    %p98 = scmp.ne.s32.totalorder %s87, %s88
    %p99 = scmp.eq.s32.totalorder %s16, 0
    %p100 = por %p98, %p99
    %p101 = scmp.ne.s32.totalorder %s87, %s88
    %p102 = scmp.eq.s32.totalorder %s17, 1
    %p103 = por %p101, %p102
    %p105 = scmp.ne.s32.totalorder %s88, %s104
    %p106 = scmp.eq.s32.totalorder %s17, 0
    %p107 = por %p105, %p106
    %s108 = ssub.s32 %s18, %s30
    %s109 = ssub.s32 %s19, %s26
    %s110 = sor.u32 %s108, %s109
    %p111 = scmp.eq.s32.totalorder %s110, 0
    %s113 = sadd.s32 %s112, 1
    %s114 = scalar_select %p111, %s112, %s113
    %p117 = pneg %p111
    %p118 = scmp.eq.s32.totalorder %s11, 1
    %p119 = por %p117, %p118
    %p120 = scmp.ne.s32.totalorder %s112, %s115
    %p121 = scmp.eq.s32.totalorder %s11, 0
    %p122 = por %p120, %p121
    %p123 = scmp.ne.s32.totalorder %s112, %s115
    %p124 = scmp.eq.s32.totalorder %s16, 1
    %p125 = por %p123, %p124
    %p126 = scmp.ne.s32.totalorder %s115, %s116
    %p127 = scmp.eq.s32.totalorder %s16, 0
    %p128 = por %p126, %p127
    %p129 = scmp.ne.s32.totalorder %s115, %s116
    %p130 = scmp.eq.s32.totalorder %s17, 1
    %p131 = por %p129, %p130
    %p133 = scmp.ne.s32.totalorder %s116, %s132
    %p134 = scmp.eq.s32.totalorder %s17, 0
    %p135 = por %p133, %p134
    %s136 = ssub.s32 %s18, %s30
    %s137 = ssub.s32 %s19, %s26
    %s138 = sor.u32 %s136, %s137
    %p139 = scmp.eq.s32.totalorder %s138, 0
    %s141 = sadd.s32 %s140, 1
    %s142 = scalar_select %p139, %s140, %s141
    %p145 = pneg %p139
    %p146 = scmp.eq.s32.totalorder %s11, 1
    %p147 = por %p145, %p146
    %p148 = scmp.ne.s32.totalorder %s140, %s143
    %p149 = scmp.eq.s32.totalorder %s11, 0
    %p150 = por %p148, %p149
    %p151 = scmp.ne.s32.totalorder %s140, %s143
    %p152 = scmp.eq.s32.totalorder %s16, 1
    %p153 = por %p151, %p152
    %p154 = scmp.ne.s32.totalorder %s143, %s144
    %p155 = scmp.eq.s32.totalorder %s16, 0
    %p156 = por %p154, %p155
    %p157 = scmp.ne.s32.totalorder %s143, %s144
    %p158 = scmp.eq.s32.totalorder %s17, 1
    %p159 = por %p157, %p158
    %p161 = scmp.ne.s32.totalorder %s144, %s160
    %p162 = scmp.eq.s32.totalorder %s17, 0
    %p163 = por %p161, %p162
    %p164 = scmp.le.s32.totalorder 1, %s11
    %p165 = scmp.lt.s32.totalorder %s11, 3
    %p166 = pnand %p164, %p165
    %p167 = pneg %p166
    // Predicated region
    $region9: #{conv_rnn_cell.2} parent=5 // pred_check
      _
    $region10: #{conv_rnn_cell.2} parent=5 // pred_check_branch
      %169 = sbr.rel (%p166) target = $region12
    $region11: #{conv_rnn_cell.2} parent=5 // pred_region
      %s170 = ssub.s32 %s11, 1
      // Predicated region
      $region13: #{conv_rnn_cell.2} parent=11 // pred_check
        %p171 = pneg %p72
      $region14: #{conv_rnn_cell.2} parent=11 // pred_check_branch
        %173 = sbr.rel (%p171) target = $region16
      $region15: #{conv_rnn_cell.2} parent=11 // pred_region
        _
      $region16: #{conv_rnn_cell.2} parent=11 // pred_fallthru
        _
    $region12: #{conv_rnn_cell.2} parent=5 // pred_fallthru
      _
    %p174 = scmp.lt.s32.totalorder %s11, 2
    // Predicated region
    $region17: #{conv_rnn_cell.2} parent=5 // pred_check
      %p175 = pneg %p174
    $region18: #{conv_rnn_cell.2} parent=5 // pred_check_branch
      %177 = sbr.rel (%p175) target = $region20
    $region19: #{conv_rnn_cell.2} parent=5 // pred_region
      // Predicated region
      $region21: #{conv_rnn_cell.2} parent=19 // pred_check
        %p178 = pneg %p45
      $region22: #{conv_rnn_cell.2} parent=19 // pred_check_branch
        %180 = sbr.rel (%p178) target = $region24
      $region23: #{conv_rnn_cell.2} parent=19 // pred_region
        %p181 = scmp.lt.s32.totalorder %s18, 1
        %s182 = scalar_select %p181, %s18, 1
        %p183 = scmp.lt.s32.totalorder %s19, 0
        %s184 = scalar_select %p183, %s19, 0
        %s185 = smul.addr %s184, 6
        %s186 = smul.addr %s182, 6
        %s187 = sadd.s32 %s185, %s186
        %s188 = smul.addr %s187, 8
        %s189 = scalar_lea.vmem %s0, %s188
      $region24: #{conv_rnn_cell.2} parent=19 // pred_fallthru
        _
    $region20: #{conv_rnn_cell.2} parent=5 // pred_fallthru
      _
    %p190 = scmp.le.s32.totalorder 1, %s11
    %p191 = scmp.lt.s32.totalorder %s11, 3
    %p192 = pnand %p190, %p191
    %p193 = pneg %p192
    // Predicated region
    $region25: #{conv_rnn_cell.2} parent=5 // pred_check
      _
    $region26: #{conv_rnn_cell.2} parent=5 // pred_check_branch
      %195 = sbr.rel (%p192) target = $region28
    $region27: #{conv_rnn_cell.2} parent=5 // pred_region
      %s196 = ssub.s32 %s11, 1
      %p197 = scmp.lt.s32.totalorder %s20, 1
      %s198 = scalar_select %p197, %s20, 1
      %p199 = scmp.lt.s32.totalorder %s21, 0
      %s200 = scalar_select %p199, %s21, 0
      %s201 = smul.addr %s200, 6
      %s202 = smul.addr %s198, 6
      %s203 = sadd.s32 %s201, %s202
      %s204 = smul.addr %s203, 8
      %s205 = scalar_lea.vmem %s0, %s204
      %p206 = pneg %p51
      %p207 = pneg %p48
      %p208 = pneg %p72
      %p209 = pneg %p69
      %p210 = pneg %p100
      %p211 = pneg %p97
      %s212 = smul.u32 2, %s21
      %p213 = scmp.lt.s32.totalorder %s20, 1
      %s214 = scalar_select %p213, %s20, 1
      %p215 = scmp.lt.s32.totalorder %s212, 1
      %s216 = scalar_select %p215, %s212, 1
      %s217 = smul.addr %s214, 4
      %s218 = sadd.s32 %s216, %s217
      %s219 = smul.addr %s218, 8
      %s220 = scalar_lea.vmem %s2, %s219
      %p221 = pneg %p128
      %p222 = pneg %p125
      %p223 = scmp.lt.s32.totalorder %s20, 1
      %s224 = scalar_select %p223, %s20, 1
      %p225 = scmp.lt.s32.totalorder %s21, 0
      %s226 = scalar_select %p225, %s21, 0
      %s227 = smul.addr %s226, 2
      %s228 = smul.addr %s224, 2
      %s229 = sadd.s32 %s227, %s228
      %s230 = smul.addr %s229, 8
      %s231 = scalar_lea.vmem %s3, %s230
      %p232 = pneg %p156
      %p233 = pneg %p153
      %p234 = scmp.lt.s32.totalorder %s20, 1
      %s235 = scalar_select %p234, %s20, 1
      %p236 = scmp.lt.s32.totalorder %s21, 0
      %s237 = scalar_select %p236, %s21, 0
      %s238 = smul.addr %s237, 2
      %s239 = smul.addr %s235, 2
      %s240 = sadd.s32 %s238, %s239
      %s241 = smul.addr %s240, 8
      %s242 = scalar_lea.vmem %s4, %s241
      %p243 = scmp.lt.s32.totalorder %s20, 1
      %s244 = scalar_select %p243, %s20, 1
      %p245 = scmp.lt.s32.totalorder %s21, 0
      %s246 = scalar_select %p245, %s21, 0
      %s247 = smul.addr %s246, 6
      %s248 = smul.addr %s244, 6
      %s249 = sadd.s32 %s247, %s248
      %s250 = smul.addr %s249, 8
      %s251 = scalar_lea.vmem %s0, %s250
      %s252 = smul.u32 2, %s21
      %p253 = scmp.lt.s32.totalorder %s20, 1
      %s254 = scalar_select %p253, %s20, 1
      %p255 = scmp.lt.s32.totalorder %s252, 1
      %s256 = scalar_select %p255, %s252, 1
      %s257 = smul.addr %s254, 4
      %s258 = sadd.s32 %s256, %s257
      %s259 = smul.addr %s258, 8
      %s260 = scalar_lea.vmem %s2, %s259
      %s261 = smul.u32 2, %s21
      %p262 = scmp.lt.s32.totalorder %s20, 1
      %s263 = scalar_select %p262, %s20, 1
      %p264 = scmp.lt.s32.totalorder %s21, 0
      %s265 = scalar_select %p264, %s21, 0
      %s266 = smul.addr %s265, 2
      %s267 = smul.addr %s263, 2
      %s268 = sadd.s32 %s266, %s267
      %s269 = smul.addr %s268, 8
      %s270 = scalar_lea.vmem %s3, %s269
      %p271 = scmp.lt.s32.totalorder %s20, 1
      %s272 = scalar_select %p271, %s20, 1
      %p273 = scmp.lt.s32.totalorder %s21, 0
      %s274 = scalar_select %p273, %s21, 0
      %s275 = smul.addr %s274, 2
      %s276 = smul.addr %s272, 2
      %s277 = sadd.s32 %s275, %s276
      %s278 = smul.addr %s277, 8
      %s279 = scalar_lea.vmem %s4, %s278
      %v280 = vld [vmem:[%s251] sm:$0xff]
      %v281 = vld [vmem:[%s251 + $0x8] sm:$0xff]
      %v282 = vld [vmem:[%s251 + $0x10] sm:$0xff]
      %v283 = vld [vmem:[%s251 + $0x18] sm:$0xf]
      %v284 = vld [vmem:[%s251 + $0x20] sm:$0xf]
      %v285 = vld [vmem:[%s251 + $0x28] sm:$0xf]
      %s286 = scalar_lea.vmem %s1, 16
      %v287 = vld [vmem:[%s286] sm:$0xff]
      %v288 = vld [vmem:[%s286 + $0x8] sm:$0xff]
      %s289 = scalar_lea.vmem %s1, 64
      %v290 = vld [vmem:[%s289] sm:$0xff]
      %v291 = vld [vmem:[%s289 + $0x8] sm:$0xff]
      %298 = vrot.lane.b32.xlu0 %v280, 111
      %v299 = vpop.permute.xlu0 %298
      %300 = vrot.lane.b32.xlu0 %v281, 111
      %v301 = vpop.permute.xlu0 %300
      %302 = vrot.lane.b32.xlu0 %v282, 111
      %v303 = vpop.permute.xlu0 %302
      %304 = vrot.lane.b32.xlu0 %v283, 111
      %v305 = vpop.permute.xlu0 %304
      %306 = vrot.lane.b32.xlu0 %v284, 111
      %v307 = vpop.permute.xlu0 %306
      %308 = vrot.lane.b32.xlu0 %v285, 111
      %v309 = vpop.permute.xlu0 %308
      %vm310 = vcmask 908288
      %v311 = vsel %vm310, %v299, %v301
      %v312 = vsel %vm310, %v301, %v303
      %v313 = vsel %vm310, %v305, %v307
      %v314 = vsel %vm310, %v307, %v309
      %vm317 = vcmask 97280
      %v319 = vsel %vm317, %v290, 0
      %v322 = vsel %vm317, %v291, 0
      %vm324 = vcmask 1043456
      %v325 = vsel %vm324, %v313, 0
      %v327 = vsel %vm324, %v314, 0
      %329 = vmatpush.msra.mxu0 0.0
      %330 = vmatpush.msra.mxu0 0.0
      %331 = vmatpush.msra.mxu0 0.0
      %332 = vmatpush.msra.mxu0 0.0
      %333 = vmatpush.msra.mxu0 0.0
      %334 = vmatpush.msra.mxu0 0.0
      %335 = vmatpush.msra.mxu0 0.0
      %336 = vmatpush.msra.mxu0 0.0
      %337 = vmatpush.msra.mxu0 0.0
      %338 = vmatpush.msra.mxu0 0.0
      %339 = vmatpush.msra.mxu0 0.0
      %340 = vmatpush.msra.mxu0 0.0
      %341 = vmatpush.msra.mxu0 0.0
      %342 = vmatpush.msra.mxu0 0.0
      %343 = vmatpush.msra.mxu0 %v325
      %344 = vmatpush.msra.mxu0 %v311
      %345 = vmatmul.f32.gmra.mxu0 %v319
      %v346 = vpop.f32.mrf.mxu0
      %v347 = vadd.f32 0.0, %v346
      %348 = vmatmul.f32.gmra.mxu0 %v322
      %v349 = vpop.f32.mrf.mxu0
      %v350 = vadd.f32 0.0, %v349
      %351 = vdwg.mxu0
      %352 = vmatpush.msra.mxu0 0.0
      %353 = vmatpush.msra.mxu0 0.0
      %354 = vmatpush.msra.mxu0 0.0
      %355 = vmatpush.msra.mxu0 0.0
      %356 = vmatpush.msra.mxu0 0.0
      %357 = vmatpush.msra.mxu0 0.0
      %358 = vmatpush.msra.mxu0 0.0
      %359 = vmatpush.msra.mxu0 0.0
      %360 = vmatpush.msra.mxu0 0.0
      %361 = vmatpush.msra.mxu0 0.0
      %362 = vmatpush.msra.mxu0 0.0
      %363 = vmatpush.msra.mxu0 0.0
      %364 = vmatpush.msra.mxu0 0.0
      %365 = vmatpush.msra.mxu0 0.0
      %366 = vmatpush.msra.mxu0 %v327
      %367 = vmatpush.msra.mxu0 %v312
      %368 = vmatmul.f32.gmra.mxu0 %v319
      %v369 = vpop.f32.mrf.mxu0
      %v370 = vadd.f32 0.0, %v369
      %371 = vmatmul.f32.gmra.mxu0 %v322
      %v372 = vpop.f32.mrf.mxu0
      %v373 = vadd.f32 0.0, %v372
      %374 = vdwg.mxu0
      %375 = vrot.lane.b32.xlu0 %v280, 127
      %v376 = vpop.permute.xlu0 %375
      %377 = vrot.lane.b32.xlu0 %v281, 127
      %v378 = vpop.permute.xlu0 %377
      %379 = vrot.lane.b32.xlu0 %v282, 127
      %v380 = vpop.permute.xlu0 %379
      %381 = vrot.lane.b32.xlu0 %v283, 127
      %v382 = vpop.permute.xlu0 %381
      %383 = vrot.lane.b32.xlu0 %v284, 127
      %v384 = vpop.permute.xlu0 %383
      %385 = vrot.lane.b32.xlu0 %v285, 127
      %v386 = vpop.permute.xlu0 %385
      %vm387 = vcmask 1039360
      %v388 = vsel %vm387, %v376, %v378
      %v389 = vsel %vm387, %v378, %v380
      %v390 = vsel %vm387, %v382, %v384
      %v391 = vsel %vm387, %v384, %v386
      %v395 = vsel %vm317, %v287, 0
      %v398 = vsel %vm317, %v288, 0
      %v400 = vsel %vm324, %v390, 0
      %v402 = vsel %vm324, %v391, 0
      %404 = vmatpush.msra.mxu0 0.0
      %405 = vmatpush.msra.mxu0 0.0
      %406 = vmatpush.msra.mxu0 0.0
      %407 = vmatpush.msra.mxu0 0.0
      %408 = vmatpush.msra.mxu0 0.0
      %409 = vmatpush.msra.mxu0 0.0
      %410 = vmatpush.msra.mxu0 0.0
      %411 = vmatpush.msra.mxu0 0.0
      %412 = vmatpush.msra.mxu0 0.0
      %413 = vmatpush.msra.mxu0 0.0
      %414 = vmatpush.msra.mxu0 0.0
      %415 = vmatpush.msra.mxu0 0.0
      %416 = vmatpush.msra.mxu0 0.0
      %417 = vmatpush.msra.mxu0 0.0
      %418 = vmatpush.msra.mxu0 %v400
      %419 = vmatpush.msra.mxu0 %v388
      %420 = vmatmul.f32.gmra.mxu0 %v395
      %v421 = vpop.f32.mrf.mxu0
      %v422 = vadd.f32 %v347, %v421
      %423 = vmatmul.f32.gmra.mxu0 %v398
      %v424 = vpop.f32.mrf.mxu0
      %v425 = vadd.f32 %v350, %v424
      %426 = vdwg.mxu0
      %427 = vmatpush.msra.mxu0 0.0
      %428 = vmatpush.msra.mxu0 0.0
      %429 = vmatpush.msra.mxu0 0.0
      %430 = vmatpush.msra.mxu0 0.0
      %431 = vmatpush.msra.mxu0 0.0
      %432 = vmatpush.msra.mxu0 0.0
      %433 = vmatpush.msra.mxu0 0.0
      %434 = vmatpush.msra.mxu0 0.0
      %435 = vmatpush.msra.mxu0 0.0
      %436 = vmatpush.msra.mxu0 0.0
      %437 = vmatpush.msra.mxu0 0.0
      %438 = vmatpush.msra.mxu0 0.0
      %439 = vmatpush.msra.mxu0 0.0
      %440 = vmatpush.msra.mxu0 0.0
      %441 = vmatpush.msra.mxu0 %v402
      %442 = vmatpush.msra.mxu0 %v389
      %443 = vmatmul.f32.gmra.mxu0 %v395
      %v444 = vpop.f32.mrf.mxu0
      %v445 = vadd.f32 %v370, %v444
      %446 = vmatmul.f32.gmra.mxu0 %v398
      %v447 = vpop.f32.mrf.mxu0
      %v448 = vadd.f32 %v373, %v447
      %449 = vdwg.mxu0
      %s450 = scalar_lea.vmem %s1, 112
      %v451 = vld [vmem:[%s450] sm:$0xff]
      %v452 = vld [vmem:[%s450 + $0x8] sm:$0xff]
      %453 = vrot.lane.b32.xlu0 %v280, 95
      %v454 = vpop.permute.xlu0 %453
      %455 = vrot.lane.b32.xlu0 %v281, 95
      %v456 = vpop.permute.xlu0 %455
      %457 = vrot.lane.b32.xlu0 %v282, 95
      %v458 = vpop.permute.xlu0 %457
      %459 = vrot.lane.b32.xlu0 %v283, 95
      %v460 = vpop.permute.xlu0 %459
      %461 = vrot.lane.b32.xlu0 %v284, 95
      %v462 = vpop.permute.xlu0 %461
      %463 = vrot.lane.b32.xlu0 %v285, 95
      %v464 = vpop.permute.xlu0 %463
      %vm465 = vcmask 777216
      %v466 = vsel %vm465, %v454, %v456
      %v467 = vsel %vm465, %v456, %v458
      %v468 = vsel %vm465, %v460, %v462
      %v469 = vsel %vm465, %v462, %v464
      %v473 = vsel %vm317, %v451, 0
      %v476 = vsel %vm317, %v452, 0
      %v478 = vsel %vm324, %v468, 0
      %v480 = vsel %vm324, %v469, 0
      %482 = vmatpush.msra.mxu0 0.0
      %483 = vmatpush.msra.mxu0 0.0
      %484 = vmatpush.msra.mxu0 0.0
      %485 = vmatpush.msra.mxu0 0.0
      %486 = vmatpush.msra.mxu0 0.0
      %487 = vmatpush.msra.mxu0 0.0
      %488 = vmatpush.msra.mxu0 0.0
      %489 = vmatpush.msra.mxu0 0.0
      %490 = vmatpush.msra.mxu0 0.0
      %491 = vmatpush.msra.mxu0 0.0
      %492 = vmatpush.msra.mxu0 0.0
      %493 = vmatpush.msra.mxu0 0.0
      %494 = vmatpush.msra.mxu0 0.0
      %495 = vmatpush.msra.mxu0 0.0
      %496 = vmatpush.msra.mxu0 %v478
      %497 = vmatpush.msra.mxu0 %v466
      %498 = vmatmul.f32.gmra.mxu0 %v473
      %v499 = vpop.f32.mrf.mxu0
      %v500 = vadd.f32 0.0, %v499
      %501 = vmatmul.f32.gmra.mxu0 %v476
      %v502 = vpop.f32.mrf.mxu0
      %v503 = vadd.f32 0.0, %v502
      %504 = vdwg.mxu0
      %505 = vmatpush.msra.mxu0 0.0
      %506 = vmatpush.msra.mxu0 0.0
      %507 = vmatpush.msra.mxu0 0.0
      %508 = vmatpush.msra.mxu0 0.0
      %509 = vmatpush.msra.mxu0 0.0
      %510 = vmatpush.msra.mxu0 0.0
      %511 = vmatpush.msra.mxu0 0.0
      %512 = vmatpush.msra.mxu0 0.0
      %513 = vmatpush.msra.mxu0 0.0
      %514 = vmatpush.msra.mxu0 0.0
      %515 = vmatpush.msra.mxu0 0.0
      %516 = vmatpush.msra.mxu0 0.0
      %517 = vmatpush.msra.mxu0 0.0
      %518 = vmatpush.msra.mxu0 0.0
      %519 = vmatpush.msra.mxu0 %v480
      %520 = vmatpush.msra.mxu0 %v467
      %521 = vmatmul.f32.gmra.mxu0 %v473
      %v522 = vpop.f32.mrf.mxu0
      %v523 = vadd.f32 0.0, %v522
      %524 = vmatmul.f32.gmra.mxu0 %v476
      %v525 = vpop.f32.mrf.mxu0
      %v526 = vadd.f32 0.0, %v525
      %527 = vdwg.mxu0
      %v528 = vadd.f32 %v422, %v500
      %v529 = vadd.f32 %v445, %v523
      %v530 = vadd.f32 %v425, %v503
      %v531 = vadd.f32 %v448, %v526
      %v532 = vld [vmem:[%s251] sm:$0xff]
      %v533 = vld [vmem:[%s251 + $0x8] sm:$0xff]
      %v534 = vld [vmem:[%s251 + $0x18] sm:$0xf]
      %v535 = vld [vmem:[%s251 + $0x20] sm:$0xf]
      %v536 = vld [vmem:[%s1] sm:$0xff]
      %v537 = vld [vmem:[%s1 + $0x8] sm:$0xff]
      %s538 = scalar_lea.vmem %s1, 48
      %v539 = vld [vmem:[%s538] sm:$0xff]
      %v540 = vld [vmem:[%s538 + $0x8] sm:$0xff]
      %541 = vrot.lane.b32.xlu0 %v280, 112
      %v542 = vpop.permute.xlu0 %541
      %543 = vrot.lane.b32.xlu0 %v281, 112
      %v544 = vpop.permute.xlu0 %543
      %545 = vrot.lane.b32.xlu0 %v282, 112
      %v546 = vpop.permute.xlu0 %545
      %547 = vrot.lane.b32.xlu0 %v283, 112
      %v548 = vpop.permute.xlu0 %547
      %549 = vrot.lane.b32.xlu0 %v284, 112
      %v550 = vpop.permute.xlu0 %549
      %551 = vrot.lane.b32.xlu0 %v285, 112
      %v552 = vpop.permute.xlu0 %551
      %vm553 = vcmask 916480
      %v554 = vsel %vm553, %v542, %v544
      %v555 = vsel %vm553, %v544, %v546
      %v556 = vsel %vm553, %v548, %v550
      %v557 = vsel %vm553, %v550, %v552
      %v561 = vsel %vm317, %v539, 0
      %v564 = vsel %vm317, %v540, 0
      %v566 = vsel %vm324, %v556, 0
      %v568 = vsel %vm324, %v557, 0
      %570 = vmatpush.msra.mxu0 0.0
      %571 = vmatpush.msra.mxu0 0.0
      %572 = vmatpush.msra.mxu0 0.0
      %573 = vmatpush.msra.mxu0 0.0
      %574 = vmatpush.msra.mxu0 0.0
      %575 = vmatpush.msra.mxu0 0.0
      %576 = vmatpush.msra.mxu0 0.0
      %577 = vmatpush.msra.mxu0 0.0
      %578 = vmatpush.msra.mxu0 0.0
      %579 = vmatpush.msra.mxu0 0.0
      %580 = vmatpush.msra.mxu0 0.0
      %581 = vmatpush.msra.mxu0 0.0
      %582 = vmatpush.msra.mxu0 0.0
      %583 = vmatpush.msra.mxu0 0.0
      %584 = vmatpush.msra.mxu0 %v566
      %585 = vmatpush.msra.mxu0 %v554
      %586 = vmatmul.f32.gmra.mxu0 %v561
      %v587 = vpop.f32.mrf.mxu0
      %v588 = vadd.f32 0.0, %v587
      %589 = vmatmul.f32.gmra.mxu0 %v564
      %v590 = vpop.f32.mrf.mxu0
      %v591 = vadd.f32 0.0, %v590
      %592 = vdwg.mxu0
      %593 = vmatpush.msra.mxu0 0.0
      %594 = vmatpush.msra.mxu0 0.0
      %595 = vmatpush.msra.mxu0 0.0
      %596 = vmatpush.msra.mxu0 0.0
      %597 = vmatpush.msra.mxu0 0.0
      %598 = vmatpush.msra.mxu0 0.0
      %599 = vmatpush.msra.mxu0 0.0
      %600 = vmatpush.msra.mxu0 0.0
      %601 = vmatpush.msra.mxu0 0.0
      %602 = vmatpush.msra.mxu0 0.0
      %603 = vmatpush.msra.mxu0 0.0
      %604 = vmatpush.msra.mxu0 0.0
      %605 = vmatpush.msra.mxu0 0.0
      %606 = vmatpush.msra.mxu0 0.0
      %607 = vmatpush.msra.mxu0 %v568
      %608 = vmatpush.msra.mxu0 %v555
      %609 = vmatmul.f32.gmra.mxu0 %v561
      %v610 = vpop.f32.mrf.mxu0
      %v611 = vadd.f32 0.0, %v610
      %612 = vmatmul.f32.gmra.mxu0 %v564
      %v613 = vpop.f32.mrf.mxu0
      %v614 = vadd.f32 0.0, %v613
      %615 = vdwg.mxu0
      %v617 = vsel %vm317, %v536, 0
      %v620 = vsel %vm317, %v537, 0
      %v623 = vsel %vm324, %v534, 0
      %v626 = vsel %vm324, %v535, 0
      %628 = vmatpush.msra.mxu0 0.0
      %629 = vmatpush.msra.mxu0 0.0
      %630 = vmatpush.msra.mxu0 0.0
      %631 = vmatpush.msra.mxu0 0.0
      %632 = vmatpush.msra.mxu0 0.0
      %633 = vmatpush.msra.mxu0 0.0
      %634 = vmatpush.msra.mxu0 0.0
      %635 = vmatpush.msra.mxu0 0.0
      %636 = vmatpush.msra.mxu0 0.0
      %637 = vmatpush.msra.mxu0 0.0
      %638 = vmatpush.msra.mxu0 0.0
      %639 = vmatpush.msra.mxu0 0.0
      %640 = vmatpush.msra.mxu0 0.0
      %641 = vmatpush.msra.mxu0 0.0
      %642 = vmatpush.msra.mxu0 %v623
      %643 = vmatpush.msra.mxu0 %v532
      %644 = vmatmul.f32.gmra.mxu0 %v617
      %v645 = vpop.f32.mrf.mxu0
      %v646 = vadd.f32 %v588, %v645
      %647 = vmatmul.f32.gmra.mxu0 %v620
      %v648 = vpop.f32.mrf.mxu0
      %v649 = vadd.f32 %v591, %v648
      %650 = vdwg.mxu0
      %651 = vmatpush.msra.mxu0 0.0
      %652 = vmatpush.msra.mxu0 0.0
      %653 = vmatpush.msra.mxu0 0.0
      %654 = vmatpush.msra.mxu0 0.0
      %655 = vmatpush.msra.mxu0 0.0
      %656 = vmatpush.msra.mxu0 0.0
      %657 = vmatpush.msra.mxu0 0.0
      %658 = vmatpush.msra.mxu0 0.0
      %659 = vmatpush.msra.mxu0 0.0
      %660 = vmatpush.msra.mxu0 0.0
      %661 = vmatpush.msra.mxu0 0.0
      %662 = vmatpush.msra.mxu0 0.0
      %663 = vmatpush.msra.mxu0 0.0
      %664 = vmatpush.msra.mxu0 0.0
      %665 = vmatpush.msra.mxu0 %v626
      %666 = vmatpush.msra.mxu0 %v533
      %667 = vmatmul.f32.gmra.mxu0 %v617
      %v668 = vpop.f32.mrf.mxu0
      %v669 = vadd.f32 %v611, %v668
      %670 = vmatmul.f32.gmra.mxu0 %v620
      %v671 = vpop.f32.mrf.mxu0
      %v672 = vadd.f32 %v614, %v671
      %673 = vdwg.mxu0
      %s674 = scalar_lea.vmem %s1, 96
      %v675 = vld [vmem:[%s674] sm:$0xff]
      %v676 = vld [vmem:[%s674 + $0x8] sm:$0xff]
      %677 = vrot.lane.b32.xlu0 %v280, 96
      %v678 = vpop.permute.xlu0 %677
      %679 = vrot.lane.b32.xlu0 %v281, 96
      %v680 = vpop.permute.xlu0 %679
      %681 = vrot.lane.b32.xlu0 %v282, 96
      %v682 = vpop.permute.xlu0 %681
      %683 = vrot.lane.b32.xlu0 %v283, 96
      %v684 = vpop.permute.xlu0 %683
      %685 = vrot.lane.b32.xlu0 %v284, 96
      %v686 = vpop.permute.xlu0 %685
      %687 = vrot.lane.b32.xlu0 %v285, 96
      %v688 = vpop.permute.xlu0 %687
      %vm689 = vcmask 785408
      %v690 = vsel %vm689, %v678, %v680
      %v691 = vsel %vm689, %v680, %v682
      %v692 = vsel %vm689, %v684, %v686
      %v693 = vsel %vm689, %v686, %v688
      %v697 = vsel %vm317, %v675, 0
      %v700 = vsel %vm317, %v676, 0
      %v702 = vsel %vm324, %v692, 0
      %v704 = vsel %vm324, %v693, 0
      %706 = vmatpush.msra.mxu0 0.0
      %707 = vmatpush.msra.mxu0 0.0
      %708 = vmatpush.msra.mxu0 0.0
      %709 = vmatpush.msra.mxu0 0.0
      %710 = vmatpush.msra.mxu0 0.0
      %711 = vmatpush.msra.mxu0 0.0
      %712 = vmatpush.msra.mxu0 0.0
      %713 = vmatpush.msra.mxu0 0.0
      %714 = vmatpush.msra.mxu0 0.0
      %715 = vmatpush.msra.mxu0 0.0
      %716 = vmatpush.msra.mxu0 0.0
      %717 = vmatpush.msra.mxu0 0.0
      %718 = vmatpush.msra.mxu0 0.0
      %719 = vmatpush.msra.mxu0 0.0
      %720 = vmatpush.msra.mxu0 %v702
      %721 = vmatpush.msra.mxu0 %v690
      %722 = vmatmul.f32.gmra.mxu0 %v697
      %v723 = vpop.f32.mrf.mxu0
      %v724 = vadd.f32 0.0, %v723
      %725 = vmatmul.f32.gmra.mxu0 %v700
      %v726 = vpop.f32.mrf.mxu0
      %v727 = vadd.f32 0.0, %v726
      %728 = vdwg.mxu0
      %729 = vmatpush.msra.mxu0 0.0
      %730 = vmatpush.msra.mxu0 0.0
      %731 = vmatpush.msra.mxu0 0.0
      %732 = vmatpush.msra.mxu0 0.0
      %733 = vmatpush.msra.mxu0 0.0
      %734 = vmatpush.msra.mxu0 0.0
      %735 = vmatpush.msra.mxu0 0.0
      %736 = vmatpush.msra.mxu0 0.0
      %737 = vmatpush.msra.mxu0 0.0
      %738 = vmatpush.msra.mxu0 0.0
      %739 = vmatpush.msra.mxu0 0.0
      %740 = vmatpush.msra.mxu0 0.0
      %741 = vmatpush.msra.mxu0 0.0
      %742 = vmatpush.msra.mxu0 0.0
      %743 = vmatpush.msra.mxu0 %v704
      %744 = vmatpush.msra.mxu0 %v691
      %745 = vmatmul.f32.gmra.mxu0 %v697
      %v746 = vpop.f32.mrf.mxu0
      %v747 = vadd.f32 0.0, %v746
      %748 = vmatmul.f32.gmra.mxu0 %v700
      %v749 = vpop.f32.mrf.mxu0
      %v750 = vadd.f32 0.0, %v749
      %751 = vdwg.mxu0
      %v752 = vadd.f32 %v646, %v724
      %v753 = vadd.f32 %v669, %v747
      %v754 = vadd.f32 %v649, %v727
      %v755 = vadd.f32 %v672, %v750
      %s756 = scalar_lea.vmem %s1, 32
      %v757 = vld [vmem:[%s756] sm:$0xff]
      %v758 = vld [vmem:[%s756 + $0x8] sm:$0xff]
      %s759 = scalar_lea.vmem %s1, 80
      %v760 = vld [vmem:[%s759] sm:$0xff]
      %v761 = vld [vmem:[%s759 + $0x8] sm:$0xff]
      %762 = vrot.lane.b32.xlu0 %v280, 110
      %v763 = vpop.permute.xlu0 %762
      %764 = vrot.lane.b32.xlu0 %v281, 110
      %v765 = vpop.permute.xlu0 %764
      %766 = vrot.lane.b32.xlu0 %v282, 110
      %v767 = vpop.permute.xlu0 %766
      %768 = vrot.lane.b32.xlu0 %v283, 110
      %v769 = vpop.permute.xlu0 %768
      %770 = vrot.lane.b32.xlu0 %v284, 110
      %v771 = vpop.permute.xlu0 %770
      %772 = vrot.lane.b32.xlu0 %v285, 110
      %v773 = vpop.permute.xlu0 %772
      %vm774 = vcmask 900096
      %v775 = vsel %vm774, %v763, %v765
      %v776 = vsel %vm774, %v765, %v767
      %v777 = vsel %vm774, %v769, %v771
      %v778 = vsel %vm774, %v771, %v773
      %v782 = vsel %vm317, %v760, 0
      %v785 = vsel %vm317, %v761, 0
      %v787 = vsel %vm324, %v777, 0
      %v789 = vsel %vm324, %v778, 0
      %791 = vmatpush.msra.mxu0 0.0
      %792 = vmatpush.msra.mxu0 0.0
      %793 = vmatpush.msra.mxu0 0.0
      %794 = vmatpush.msra.mxu0 0.0
      %795 = vmatpush.msra.mxu0 0.0
      %796 = vmatpush.msra.mxu0 0.0
      %797 = vmatpush.msra.mxu0 0.0
      %798 = vmatpush.msra.mxu0 0.0
      %799 = vmatpush.msra.mxu0 0.0
      %800 = vmatpush.msra.mxu0 0.0
      %801 = vmatpush.msra.mxu0 0.0
      %802 = vmatpush.msra.mxu0 0.0
      %803 = vmatpush.msra.mxu0 0.0
      %804 = vmatpush.msra.mxu0 0.0
      %805 = vmatpush.msra.mxu0 %v787
      %806 = vmatpush.msra.mxu0 %v775
      %807 = vmatmul.f32.gmra.mxu0 %v782
      %v808 = vpop.f32.mrf.mxu0
      %v809 = vadd.f32 0.0, %v808
      %810 = vmatmul.f32.gmra.mxu0 %v785
      %v811 = vpop.f32.mrf.mxu0
      %v812 = vadd.f32 0.0, %v811
      %813 = vdwg.mxu0
      %814 = vmatpush.msra.mxu0 0.0
      %815 = vmatpush.msra.mxu0 0.0
      %816 = vmatpush.msra.mxu0 0.0
      %817 = vmatpush.msra.mxu0 0.0
      %818 = vmatpush.msra.mxu0 0.0
      %819 = vmatpush.msra.mxu0 0.0
      %820 = vmatpush.msra.mxu0 0.0
      %821 = vmatpush.msra.mxu0 0.0
      %822 = vmatpush.msra.mxu0 0.0
      %823 = vmatpush.msra.mxu0 0.0
      %824 = vmatpush.msra.mxu0 0.0
      %825 = vmatpush.msra.mxu0 0.0
      %826 = vmatpush.msra.mxu0 0.0
      %827 = vmatpush.msra.mxu0 0.0
      %828 = vmatpush.msra.mxu0 %v789
      %829 = vmatpush.msra.mxu0 %v776
      %830 = vmatmul.f32.gmra.mxu0 %v782
      %v831 = vpop.f32.mrf.mxu0
      %v832 = vadd.f32 0.0, %v831
      %833 = vmatmul.f32.gmra.mxu0 %v785
      %v834 = vpop.f32.mrf.mxu0
      %v835 = vadd.f32 0.0, %v834
      %836 = vdwg.mxu0
      %837 = vrot.lane.b32.xlu0 %v280, 126
      %v838 = vpop.permute.xlu0 %837
      %839 = vrot.lane.b32.xlu0 %v281, 126
      %v840 = vpop.permute.xlu0 %839
      %841 = vrot.lane.b32.xlu0 %v282, 126
      %v842 = vpop.permute.xlu0 %841
      %843 = vrot.lane.b32.xlu0 %v283, 126
      %v844 = vpop.permute.xlu0 %843
      %845 = vrot.lane.b32.xlu0 %v284, 126
      %v846 = vpop.permute.xlu0 %845
      %847 = vrot.lane.b32.xlu0 %v285, 126
      %v848 = vpop.permute.xlu0 %847
      %vm849 = vcmask 1031168
      %v850 = vsel %vm849, %v838, %v840
      %v851 = vsel %vm849, %v840, %v842
      %v852 = vsel %vm849, %v844, %v846
      %v853 = vsel %vm849, %v846, %v848
      %v857 = vsel %vm317, %v757, 0
      %v860 = vsel %vm317, %v758, 0
      %v862 = vsel %vm324, %v852, 0
      %v864 = vsel %vm324, %v853, 0
      %866 = vmatpush.msra.mxu0 0.0
      %867 = vmatpush.msra.mxu0 0.0
      %868 = vmatpush.msra.mxu0 0.0
      %869 = vmatpush.msra.mxu0 0.0
      %870 = vmatpush.msra.mxu0 0.0
      %871 = vmatpush.msra.mxu0 0.0
      %872 = vmatpush.msra.mxu0 0.0
      %873 = vmatpush.msra.mxu0 0.0
      %874 = vmatpush.msra.mxu0 0.0
      %875 = vmatpush.msra.mxu0 0.0
      %876 = vmatpush.msra.mxu0 0.0
      %877 = vmatpush.msra.mxu0 0.0
      %878 = vmatpush.msra.mxu0 0.0
      %879 = vmatpush.msra.mxu0 0.0
      %880 = vmatpush.msra.mxu0 %v862
      %881 = vmatpush.msra.mxu0 %v850
      %882 = vmatmul.f32.gmra.mxu0 %v857
      %v883 = vpop.f32.mrf.mxu0
      %v884 = vadd.f32 %v809, %v883
      %885 = vmatmul.f32.gmra.mxu0 %v860
      %v886 = vpop.f32.mrf.mxu0
      %v887 = vadd.f32 %v812, %v886
      %888 = vdwg.mxu0
      %889 = vmatpush.msra.mxu0 0.0
      %890 = vmatpush.msra.mxu0 0.0
      %891 = vmatpush.msra.mxu0 0.0
      %892 = vmatpush.msra.mxu0 0.0
      %893 = vmatpush.msra.mxu0 0.0
      %894 = vmatpush.msra.mxu0 0.0
      %895 = vmatpush.msra.mxu0 0.0
      %896 = vmatpush.msra.mxu0 0.0
      %897 = vmatpush.msra.mxu0 0.0
      %898 = vmatpush.msra.mxu0 0.0
      %899 = vmatpush.msra.mxu0 0.0
      %900 = vmatpush.msra.mxu0 0.0
      %901 = vmatpush.msra.mxu0 0.0
      %902 = vmatpush.msra.mxu0 0.0
      %903 = vmatpush.msra.mxu0 %v864
      %904 = vmatpush.msra.mxu0 %v851
      %905 = vmatmul.f32.gmra.mxu0 %v857
      %v906 = vpop.f32.mrf.mxu0
      %v907 = vadd.f32 %v832, %v906
      %908 = vmatmul.f32.gmra.mxu0 %v860
      %v909 = vpop.f32.mrf.mxu0
      %v910 = vadd.f32 %v835, %v909
      %911 = vdwg.mxu0
      %s912 = scalar_lea.vmem %s1, 128
      %v913 = vld [vmem:[%s912] sm:$0xff]
      %v914 = vld [vmem:[%s912 + $0x8] sm:$0xff]
      %915 = vrot.lane.b32.xlu0 %v280, 94
      %v916 = vpop.permute.xlu0 %915
      %917 = vrot.lane.b32.xlu0 %v281, 94
      %v918 = vpop.permute.xlu0 %917
      %919 = vrot.lane.b32.xlu0 %v282, 94
      %v920 = vpop.permute.xlu0 %919
      %921 = vrot.lane.b32.xlu0 %v283, 94
      %v922 = vpop.permute.xlu0 %921
      %923 = vrot.lane.b32.xlu0 %v284, 94
      %v924 = vpop.permute.xlu0 %923
      %925 = vrot.lane.b32.xlu0 %v285, 94
      %v926 = vpop.permute.xlu0 %925
      %vm927 = vcmask 769024
      %v928 = vsel %vm927, %v916, %v918
      %v929 = vsel %vm927, %v918, %v920
      %v930 = vsel %vm927, %v922, %v924
      %v931 = vsel %vm927, %v924, %v926
      %v935 = vsel %vm317, %v913, 0
      %v938 = vsel %vm317, %v914, 0
      %v940 = vsel %vm324, %v930, 0
      %v942 = vsel %vm324, %v931, 0
      %944 = vmatpush.msra.mxu0 0.0
      %945 = vmatpush.msra.mxu0 0.0
      %946 = vmatpush.msra.mxu0 0.0
      %947 = vmatpush.msra.mxu0 0.0
      %948 = vmatpush.msra.mxu0 0.0
      %949 = vmatpush.msra.mxu0 0.0
      %950 = vmatpush.msra.mxu0 0.0
      %951 = vmatpush.msra.mxu0 0.0
      %952 = vmatpush.msra.mxu0 0.0
      %953 = vmatpush.msra.mxu0 0.0
      %954 = vmatpush.msra.mxu0 0.0
      %955 = vmatpush.msra.mxu0 0.0
      %956 = vmatpush.msra.mxu0 0.0
      %957 = vmatpush.msra.mxu0 0.0
      %958 = vmatpush.msra.mxu0 %v940
      %959 = vmatpush.msra.mxu0 %v928
      %960 = vmatmul.f32.gmra.mxu0 %v935
      %v961 = vpop.f32.mrf.mxu0
      %v962 = vadd.f32 0.0, %v961
      %963 = vmatmul.f32.gmra.mxu0 %v938
      %v964 = vpop.f32.mrf.mxu0
      %v965 = vadd.f32 0.0, %v964
      %966 = vdwg.mxu0
      %967 = vmatpush.msra.mxu0 0.0
      %968 = vmatpush.msra.mxu0 0.0
      %969 = vmatpush.msra.mxu0 0.0
      %970 = vmatpush.msra.mxu0 0.0
      %971 = vmatpush.msra.mxu0 0.0
      %972 = vmatpush.msra.mxu0 0.0
      %973 = vmatpush.msra.mxu0 0.0
      %974 = vmatpush.msra.mxu0 0.0
      %975 = vmatpush.msra.mxu0 0.0
      %976 = vmatpush.msra.mxu0 0.0
      %977 = vmatpush.msra.mxu0 0.0
      %978 = vmatpush.msra.mxu0 0.0
      %979 = vmatpush.msra.mxu0 0.0
      %980 = vmatpush.msra.mxu0 0.0
      %981 = vmatpush.msra.mxu0 %v942
      %982 = vmatpush.msra.mxu0 %v929
      %983 = vmatmul.f32.gmra.mxu0 %v935
      %v984 = vpop.f32.mrf.mxu0
      %v985 = vadd.f32 0.0, %v984
      %986 = vmatmul.f32.gmra.mxu0 %v938
      %v987 = vpop.f32.mrf.mxu0
      %v988 = vadd.f32 0.0, %v987
      %989 = vdwg.mxu0
      %v990 = vadd.f32 %v884, %v962
      %v991 = vadd.f32 %v907, %v985
      %v992 = vadd.f32 %v887, %v965
      %v993 = vadd.f32 %v910, %v988
      %s994 = smul.u32 %s21, 256
      %v995 = vlaneseq
      %v996 = vand.u32 %v995, 127
      %v997 = vadd.s32 %v996, 128
      %v998 = vstv %s994
      %v999 = vadd.s32 %v998, %v996
      %v1000 = vadd.s32 %v998, %v997
      %vm1001 = vcmp.lt.s32.totalorder %v999, 0
      %v1002 = vsub.s32 0, %v999
      %v1003 = vsel %vm1001, %v1002, %v999
      %v1004 = vshrl.u32 %v1003, 4
      %v1005 = vand.u32 %v1003, 15
      %v1006 = vsub.s32 0, %v1005
      %v1007 = vsel %vm1001, %v1006, %v1005
      %vm1008 = vcmp.lt.s32.totalorder %v1000, 0
      %v1009 = vsub.s32 0, %v1000
      %v1010 = vsel %vm1008, %v1009, %v1000
      %v1011 = vshrl.u32 %v1010, 4
      %v1012 = vand.u32 %v1010, 15
      %v1013 = vsub.s32 0, %v1012
      %v1014 = vsel %vm1008, %v1013, %v1012
      %vm1015 = vcmp.ne.s32.totalorder %v1007, 0
      %vm1016 = vcmp.ne.s32.totalorder %v1014, 0
      %vm1017 = vcmp.lt.s32.totalorder %v1007, 0
      %vm1018 = vcmp.lt.s32.totalorder %v1014, 0
      %vm1019 = vmand %vm1017, %vm1015
      %vm1020 = vmand %vm1018, %vm1016
      %v1021 = vadd.s32 %v1007, 16
      %v1022 = vadd.s32 %v1014, 16
      %v1023 = vsel %vm1019, %v1021, %v1007
      %v1024 = vsel %vm1020, %v1022, %v1014
      %vm1025 = vcmp.ne.s32.totalorder %v1023, 0
      %vm1026 = vcmp.ne.s32.totalorder %v1024, 0
      %v1027 = vsel %vm1025, 1, 0
      %v1028 = vsel %vm1026, 1, 0
      %vm1029 = vcmp.eq.s32.totalorder %v1027, 1
      %vm1030 = vcmp.eq.s32.totalorder %v1028, 1
      %v1031 = vsel %vm1029, %v752, 0.0
      %v1032 = vsel %vm1030, %v753, 0.0
      %v1033 = vsel %vm1029, %v754, 0.0
      %v1034 = vsel %vm1030, %v755, 0.0
      %v1035 = vadd.f32 %v528, %v1031
      %v1036 = vadd.f32 %v529, %v1032
      %v1037 = vadd.f32 %v530, %v1033
      %v1038 = vadd.f32 %v531, %v1034
      %vm1039 = vcmp.ne.s32.totalorder %v1023, 15
      %vm1040 = vcmp.ne.s32.totalorder %v1024, 15
      %v1041 = vsel %vm1039, 1, 0
      %v1042 = vsel %vm1040, 1, 0
      %vm1043 = vcmp.eq.s32.totalorder %v1041, 1
      %vm1044 = vcmp.eq.s32.totalorder %v1042, 1
      %v1045 = vsel %vm1043, %v990, 0.0
      %v1046 = vsel %vm1044, %v991, 0.0
      %v1047 = vsel %vm1043, %v992, 0.0
      %v1048 = vsel %vm1044, %v993, 0.0
      %v1049 = vadd.f32 %v1035, %v1045
      %v1050 = vadd.f32 %v1036, %v1046
      %v1051 = vadd.f32 %v1037, %v1047
      %v1052 = vadd.f32 %v1038, %v1048
      %1053 = vst [vmem:[%s260] sm:$0xff] %v1049
      %1054 = vst [vmem:[%s260 + $0x8] sm:$0xff] %v1050
      %1055 = vst [vmem:[%s260 + $0x10] sm:$0xff] %v1051
      %1056 = vst [vmem:[%s260 + $0x18] sm:$0xff] %v1052
      %v1057 = vadd.f32 %v1049, %v1050
      %1058 = vadd.xlane.f32.xlu0 %v1057
      %v1059 = vpop.xlane.xlu0 %1058
      %v1060 = vadd.f32 %v1051, %v1052
      %1061 = vadd.xlane.f32.xlu0 %v1060
      %v1062 = vpop.xlane.xlu0 %1061
      %vm1063 = vcmask 7168
      %1064 = vst.msk [vmem:[%s270] sm:$0xff] %vm1063, %v1059
      %1065 = vst.msk [vmem:[%s270 + $0x8] sm:$0xff] %vm1063, %v1062
      %v1066 = vmul.f32 %v1049, %v1049
      %v1067 = vmul.f32 %v1050, %v1050
      %v1068 = vmul.f32 %v1051, %v1051
      %v1069 = vmul.f32 %v1052, %v1052
      %v1070 = vadd.f32 %v1066, %v1067
      %1071 = vadd.xlane.f32.xlu0 %v1070
      %v1072 = vpop.xlane.xlu0 %1071
      %v1073 = vadd.f32 %v1068, %v1069
      %1074 = vadd.xlane.f32.xlu0 %v1073
      %v1075 = vpop.xlane.xlu0 %1074
      %1076 = vst.msk [vmem:[%s279] sm:$0xff] %vm1063, %v1072
      %1077 = vst.msk [vmem:[%s279 + $0x8] sm:$0xff] %vm1063, %v1075
      %s1078 = smul.u32 2, %s21
      %p1079 = scmp.lt.s32.totalorder %s20, 1
      %s1080 = scalar_select %p1079, %s20, 1
      %p1081 = scmp.lt.s32.totalorder %s1078, 1
      %s1082 = scalar_select %p1081, %s1078, 1
      %s1083 = smul.addr %s1080, 4
      %s1084 = sadd.s32 %s1082, %s1083
      %s1085 = smul.addr %s1084, 8
      %s1086 = scalar_lea.vmem %s2, %s1085
      %p1087 = scmp.lt.s32.totalorder %s20, 1
      %s1088 = scalar_select %p1087, %s20, 1
      %p1089 = scmp.lt.s32.totalorder %s21, 0
      %s1090 = scalar_select %p1089, %s21, 0
      %s1091 = smul.addr %s1090, 2
      %s1092 = smul.addr %s1088, 2
      %s1093 = sadd.s32 %s1091, %s1092
      %s1094 = smul.addr %s1093, 8
      %s1095 = scalar_lea.vmem %s3, %s1094
      %p1096 = scmp.lt.s32.totalorder %s20, 1
      %s1097 = scalar_select %p1096, %s20, 1
      %p1098 = scmp.lt.s32.totalorder %s21, 0
      %s1099 = scalar_select %p1098, %s21, 0
      %s1100 = smul.addr %s1099, 2
      %s1101 = smul.addr %s1097, 2
      %s1102 = sadd.s32 %s1100, %s1101
      %s1103 = smul.addr %s1102, 8
      %s1104 = scalar_lea.vmem %s4, %s1103
      // Predicated region
      $region29: #{conv_rnn_cell.2} parent=27 // pred_check
        %p1105 = pneg %p97
      $region30: #{conv_rnn_cell.2} parent=27 // pred_check_branch
        %1107 = sbr.rel (%p1105) target = $region32
      $region31: #{conv_rnn_cell.2} parent=27 // pred_region
        %s1108 = smul.u32 2, %s21
      $region32: #{conv_rnn_cell.2} parent=27 // pred_fallthru
        _
      // Predicated region
      $region33: #{conv_rnn_cell.2} parent=27 // pred_check
        %p1109 = pneg %p125
      $region34: #{conv_rnn_cell.2} parent=27 // pred_check_branch
        %1111 = sbr.rel (%p1109) target = $region36
      $region35: #{conv_rnn_cell.2} parent=27 // pred_region
        _
      $region36: #{conv_rnn_cell.2} parent=27 // pred_fallthru
        _
      // Predicated region
      $region37: #{conv_rnn_cell.2} parent=27 // pred_check
        %p1112 = pneg %p153
      $region38: #{conv_rnn_cell.2} parent=27 // pred_check_branch
        %1114 = sbr.rel (%p1112) target = $region40
      $region39: #{conv_rnn_cell.2} parent=27 // pred_region
        _
      $region40: #{conv_rnn_cell.2} parent=27 // pred_fallthru
        _
    $region28: #{conv_rnn_cell.2} parent=5 // pred_fallthru
      _
    %p1115 = scmp.le.s32.totalorder 2, %s11
    // Predicated region
    $region41: #{conv_rnn_cell.2} parent=5 // pred_check
      %p1116 = pneg %p1115
    $region42: #{conv_rnn_cell.2} parent=5 // pred_check_branch
      %1118 = sbr.rel (%p1116) target = $region44
    $region43: #{conv_rnn_cell.2} parent=5 // pred_region
      %s1119 = ssub.s32 %s11, 2
      // Predicated region
      $region45: #{conv_rnn_cell.2} parent=43 // pred_check
        %p1120 = pneg %p103
      $region46: #{conv_rnn_cell.2} parent=43 // pred_check_branch
        %1122 = sbr.rel (%p1120) target = $region48
      $region47: #{conv_rnn_cell.2} parent=43 // pred_region
        %s1123 = smul.u32 2, %s23
        %p1124 = scmp.lt.s32.totalorder %s22, 1
        %s1125 = scalar_select %p1124, %s22, 1
        %p1126 = scmp.lt.s32.totalorder %s1123, 1
        %s1127 = scalar_select %p1126, %s1123, 1
        %s1128 = smul.addr %s1125, 4
        %s1129 = sadd.s32 %s1127, %s1128
        %s1130 = smul.addr %s1129, 8
        %s1131 = scalar_lea.vmem %s2, %s1130
      $region48: #{conv_rnn_cell.2} parent=43 // pred_fallthru
        _
      // Predicated region
      $region49: #{conv_rnn_cell.2} parent=43 // pred_check
        %p1132 = pneg %p131
      $region50: #{conv_rnn_cell.2} parent=43 // pred_check_branch
        %1134 = sbr.rel (%p1132) target = $region52
      $region51: #{conv_rnn_cell.2} parent=43 // pred_region
        %p1135 = scmp.lt.s32.totalorder %s22, 1
        %s1136 = scalar_select %p1135, %s22, 1
        %p1137 = scmp.lt.s32.totalorder %s23, 0
        %s1138 = scalar_select %p1137, %s23, 0
        %s1139 = smul.addr %s1138, 2
        %s1140 = smul.addr %s1136, 2
        %s1141 = sadd.s32 %s1139, %s1140
        %s1142 = smul.addr %s1141, 8
        %s1143 = scalar_lea.vmem %s3, %s1142
      $region52: #{conv_rnn_cell.2} parent=43 // pred_fallthru
        _
      // Predicated region
      $region53: #{conv_rnn_cell.2} parent=43 // pred_check
        %p1144 = pneg %p159
      $region54: #{conv_rnn_cell.2} parent=43 // pred_check_branch
        %1146 = sbr.rel (%p1144) target = $region56
      $region55: #{conv_rnn_cell.2} parent=43 // pred_region
        %p1147 = scmp.lt.s32.totalorder %s22, 1
        %s1148 = scalar_select %p1147, %s22, 1
        %p1149 = scmp.lt.s32.totalorder %s23, 0
        %s1150 = scalar_select %p1149, %s23, 0
        %s1151 = smul.addr %s1150, 2
        %s1152 = smul.addr %s1148, 2
        %s1153 = sadd.s32 %s1151, %s1152
        %s1154 = smul.addr %s1153, 8
        %s1155 = scalar_lea.vmem %s4, %s1154
      $region56: #{conv_rnn_cell.2} parent=43 // pred_fallthru
        _
    $region44: #{conv_rnn_cell.2} parent=5 // pred_fallthru
      _
  $region6: #{conv_rnn_cell.2} parent=0 // loop_footer
    %s15 = sadd.s32 1, %s11
  $region7: #{conv_rnn_cell.2} parent=0 // loop_footer_branch
    %10 = sbr.rel target = $region3
  $region8: #{conv_rnn_cell.2} parent=0 // loop_exit
    _

</llo_original>
